<compile_context>
chip_gen: v7x
topology: tpu7x:2x2x1
jax: 0.10.0
libtpu: 0.0.40
codegen_flags: <defaults>
</compile_context>

<pallas_src>
import jax
import jax.numpy as jnp
import numpy as np
from jax.experimental import pallas as pl
from jax.experimental.pallas import tpu as pltpu


def _round_up(n, m):
    return ((n + m - 1) // m) * m


def lstm_kernel(x_ref, wih_ref, whh_ref, b_ref, h_out_ref, xproj_ref):
    """Whole LSTM recurrence for one batch block.

    x_ref:     (BB, T, D)      f32 input slice (batch_first layout)
    wih_ref:   (D, 4*Hpad)     W_ih^T, gate-padded to 128-lane slabs (order i,f,g,o)
    whh_ref:   (Hpad, 4*Hpad)  W_hh^T, row- and gate-padded
    b_ref:     (1, 4*Hpad)     b_ih + b_hh, gate-padded, f32
    h_out_ref: (BB, Hpad)      final hidden state (lane-dense; sliced to H in wrapper)
    xproj_ref: (T, BB, 4*Hpad) f32 VMEM scratch: time-major hoisted input projection
    """
    x = x_ref[...]
    wih = wih_ref[...]
    whh = whh_ref[...]
    bias = b_ref[...]

    BB, T, D = x.shape
    Hpad = whh.shape[0]
    G = 4 * Hpad

    # ---- Hoisted input projection: one MXU matmul for all T timesteps. -------------
    x_mm = x.reshape(BB * T, D).astype(wih.dtype)
    xproj = jnp.dot(x_mm, wih, preferred_element_type=jnp.float32) + bias   # (BB*T, G)
    xproj = xproj.reshape(BB, T, G)
    # One-time relayout into the time-major scratch, OFF the serial recurrence chain.
    # (Static slices + contiguous stores; the per-step loop below only does
    #  contiguous full-tile loads.)
    for t in range(T):
        xproj_ref[t] = xproj[:, t, :]

    # ---- Serial recurrence: one MXU push + full-vreg f32 gate math per step. -------
    def step(t, carry):
        h, c = carry
        gates = xproj_ref[t] + jnp.dot(h.astype(whh.dtype), whh,
                                       preferred_element_type=jnp.float32)  # (BB, G)
        # sigmoid(x) = 0.5*(1 + tanh(0.5*x)): 1 EUP push per slab instead of
        # exp + reciprocal; i & f fused on the contiguous [0 : 2*Hpad] slab.
        i_f = 0.5 * (1.0 + jnp.tanh(0.5 * gates[:, :2 * Hpad]))
        i = i_f[:, :Hpad]
        f = i_f[:, Hpad:]
        g = jnp.tanh(gates[:, 2 * Hpad:3 * Hpad])
        o = 0.5 * (1.0 + jnp.tanh(0.5 * gates[:, 3 * Hpad:]))
        c = f * c + i * g
        h = o * jnp.tanh(c)
        return h, c

    h0 = jnp.zeros((BB, Hpad), jnp.float32)
    c0 = jnp.zeros((BB, Hpad), jnp.float32)
    # Bounded-live-range loop; fully unrolled straight-line code for short T.
    # For very long T, a time-chunk inner pipeline (emit_pipeline over T-chunks with
    # h/c carried in scratch) would keep x/xproj residency O(chunk) instead of O(T).
    h, _ = jax.lax.fori_loop(0, T, step, (h0, c0),
                             unroll=True if T <= 16 else 8)

    h_out_ref[...] = h.astype(h_out_ref.dtype)


def _pad_gate_cols(w_t, H, Hpad):
    """(K, 4H) with gate-ordered columns (i,f,g,o) -> (K, 4*Hpad): each gate gets its
    own 128-lane-aligned slab, zero-padded in the extra lanes."""
    K = w_t.shape[0]
    w4 = w_t.reshape(K, 4, H)
    out = jnp.zeros((K, 4, Hpad), w_t.dtype).at[:, :, :H].set(w4)
    return out.reshape(K, 4 * Hpad)


def _choose_batch_block(B):
    """Sublane-aligned (multiple of 8), capped at 32 so gates/h/c stay register-
    resident through the recurrence; at least 2 blocks whenever B > 8 so the
    'parallel' batch axis can feed both TensorCores (v7x) and pipeline blocks."""
    BB = min(_round_up(B, 8), 32)
    if B > 8:
        BB = min(BB, _round_up((B + 1) // 2, 8))
    return BB


def lstm_encoder(x, w_ih, w_hh, b_ih, b_hh, *, matmul_dtype=jnp.bfloat16):
    """x: (B, T, D) f32, w_ih: (4H, D), w_hh: (4H, H), b_*: (4H,).
    Returns h_T: (B, H) f32 (== PyTorch `hidden[0]` for a single-layer LSTM).
    matmul_dtype: dtype of the MXU operands (bf16 default; accumulation is always f32,
    gate math is always f32). Pass jnp.float32 for a bit-faithful f32 path."""
    B, T, D = x.shape
    H4 = w_ih.shape[0]
    H = H4 // 4
    Hpad = _round_up(H, 128)
    G = 4 * Hpad

    # One-time weight/bias prep (off the critical path).
    wih_p = _pad_gate_cols(jnp.transpose(w_ih), H, Hpad).astype(matmul_dtype)       # (D, G)
    whh_rows = jnp.zeros((Hpad, H4), w_hh.dtype).at[:H, :].set(jnp.transpose(w_hh))
    whh_p = _pad_gate_cols(whh_rows, H, Hpad).astype(matmul_dtype)                  # (Hpad, G)
    b4 = (b_ih + b_hh).astype(jnp.float32).reshape(4, H)
    b_p = jnp.zeros((4, Hpad), jnp.float32).at[:, :H].set(b4).reshape(1, G)         # (1, G)

    # Batch is the only parallel axis (rows are independent).
    BB = _choose_batch_block(B)
    grid_b = (B + BB - 1) // BB
    Bp = grid_b * BB
    if Bp != B:
        x = jnp.pad(x, ((0, Bp - B), (0, 0), (0, 0)))   # zero rows; sliced off below

    # Explicit scoped-VMEM budget (v5e default is only 16 MiB; v7x physical is 64 MiB).
    mm_bytes = jnp.dtype(matmul_dtype).itemsize
    vmem_est = (
        2 * BB * T * D * 4          # x block (double-buffered)
        + 2 * D * G * mm_bytes      # W_ih^T
        + 2 * Hpad * G * mm_bytes   # W_hh^T
        + 2 * 8 * G * 4             # bias (sublane-padded)
        + 2 * BB * Hpad * 4         # output block
        + T * BB * G * 4            # time-major xproj scratch
    )
    vmem_limit = int(min(max(2 * vmem_est + (4 << 20), 32 << 20), 64 << 20))

    h_pad = pl.pallas_call(
        lstm_kernel,
        out_shape=jax.ShapeDtypeStruct((Bp, Hpad), jnp.float32),
        grid_spec=pltpu.PrefetchScalarGridSpec(
            num_scalar_prefetch=0,
            grid=(grid_b,),
            in_specs=[
                pl.BlockSpec((BB, T, D), lambda i: (i, 0, 0)),   # x (batch_first)
                pl.BlockSpec((D, G), lambda i: (0, 0)),          # W_ih^T (VMEM-resident)
                pl.BlockSpec((Hpad, G), lambda i: (0, 0)),       # W_hh^T (VMEM-resident)
                pl.BlockSpec((1, G), lambda i: (0, 0)),          # bias   (VMEM-resident)
            ],
            out_specs=pl.BlockSpec((BB, Hpad), lambda i: (i, 0)),   # lane-dense h_T
            scratch_shapes=[pltpu.VMEM((T, BB, G), jnp.float32)],   # time-major xproj
        ),
        compiler_params=pltpu.CompilerParams(
            dimension_semantics=("parallel",),
            vmem_limit_bytes=vmem_limit,
        ),
    )(x, wih_p, whh_p, b_p)

    return h_pad[:B, :H]


def lstm_encoder_ref(x, w_ih, w_hh, b_ih, b_hh):
    """Pure-JAX reference with PyTorch LSTM semantics (gate order i, f, g, o)."""
    B, T, D = x.shape
    H = w_hh.shape[1]

    def step(carry, x_t):
        h, c = carry
        gates = x_t @ w_ih.T + h @ w_hh.T + b_ih + b_hh
        i = jax.nn.sigmoid(gates[:, 0 * H:1 * H])
        f = jax.nn.sigmoid(gates[:, 1 * H:2 * H])
        g = jnp.tanh(gates[:, 2 * H:3 * H])
        o = jax.nn.sigmoid(gates[:, 3 * H:4 * H])
        c_new = f * c + i * g
        h_new = o * jnp.tanh(c_new)
        return (h_new, c_new), None

    h0 = jnp.zeros((B, H), jnp.float32)
    c0 = jnp.zeros((B, H), jnp.float32)
    (h_final, _), _ = jax.lax.scan(step, (h0, c0), jnp.transpose(x, (1, 0, 2)))
    return h_final


if __name__ == "__main__":
    # Small shapes consistent with the module: batch=2, seq=8, input_dim=16, latent_dim=32.
    B, T, D, H = 2, 8, 16, 32

    key = jax.random.PRNGKey(0)
    kx, k1, k2, k3, k4 = jax.random.split(key, 5)

    # Deterministic parameter init (PyTorch nn.LSTM default: U(-1/sqrt(H), 1/sqrt(H))).
    bound = 1.0 / float(np.sqrt(H))
    x = jax.random.normal(kx, (B, T, D), dtype=jnp.float32)
    w_ih = jax.random.uniform(k1, (4 * H, D), jnp.float32, -bound, bound)
    w_hh = jax.random.uniform(k2, (4 * H, H), jnp.float32, -bound, bound)
    b_ih = jax.random.uniform(k3, (4 * H,), jnp.float32, -bound, bound)
    b_hh = jax.random.uniform(k4, (4 * H,), jnp.float32, -bound, bound)

    h_ref = jax.block_until_ready(lstm_encoder_ref(x, w_ih, w_hh, b_ih, b_hh))

    # f32 MXU path: matches the f32 reference tightly.
    h_f32 = jax.block_until_ready(
        lstm_encoder(x, w_ih, w_hh, b_ih, b_hh, matmul_dtype=jnp.float32))
    assert h_f32.shape == (B, H)
    np.testing.assert_allclose(np.asarray(h_f32), np.asarray(h_ref),
                               rtol=5e-4, atol=5e-4)

    # Default perf path (bf16 MXU operands, f32 accumulation + f32 gate math).
    h_bf16 = jax.block_until_ready(lstm_encoder(x, w_ih, w_hh, b_ih, b_hh))
    assert h_bf16.shape == (B, H)
    np.testing.assert_allclose(np.asarray(h_bf16), np.asarray(h_ref),
                               rtol=5e-2, atol=5e-2)

    print("KERNEL_OK")
</pallas_src>

<mosaic_0001>
module attributes {stable_mosaic.version = 11 : i64} {
  func.func @lstm_kernel(%arg0: i32, %arg1: memref<8x8x16xf32, #tpu.memory_space<vmem>>, %arg2: memref<16x512xf32, #tpu.memory_space<vmem>>, %arg3: memref<128x512xf32, #tpu.memory_space<vmem>>, %arg4: memref<1x512xf32, #tpu.memory_space<vmem>>, %arg5: memref<8x128xf32, #tpu.memory_space<vmem>>, %arg6: memref<8x8x512xf32, #tpu.memory_space<vmem>>) attributes {dimension_semantics = [#tpu.dimension_semantics<parallel>], iteration_bounds = array<i64: 1>, scalar_prefetch = 0 : i64, scratch_operands = 1 : i64, tpu.core_type = #tpu.core_type<tc>, window_params = [{transform_indices = @transform_0, window_bounds = array<i64: 8, 8, 16>}, {pipeline_mode = #tpu.pipeline_mode<synchronous>, transform_indices = @transform_1, window_bounds = array<i64: 16, 512>}, {pipeline_mode = #tpu.pipeline_mode<synchronous>, transform_indices = @transform_2, window_bounds = array<i64: 128, 512>}, {pipeline_mode = #tpu.pipeline_mode<synchronous>, transform_indices = @transform_3, window_bounds = array<i64: 1, 512>}, {transform_indices = @transform_4, window_bounds = array<i64: 8, 128>}]} {
    %c0 = arith.constant 0 : index
    %c0_0 = arith.constant 0 : index
    %c0_1 = arith.constant 0 : index
    %0 = vector.load %arg1[%c0, %c0_0, %c0_1] : memref<8x8x16xf32, #tpu.memory_space<vmem>>, vector<8x8x16xf32>
    %c0_2 = arith.constant 0 : index
    %c0_3 = arith.constant 0 : index
    %1 = vector.load %arg2[%c0_2, %c0_3] : memref<16x512xf32, #tpu.memory_space<vmem>>, vector<16x512xf32>
    %c0_4 = arith.constant 0 : index
    %c0_5 = arith.constant 0 : index
    %2 = vector.load %arg3[%c0_4, %c0_5] : memref<128x512xf32, #tpu.memory_space<vmem>>, vector<128x512xf32>
    %c0_6 = arith.constant 0 : index
    %c0_7 = arith.constant 0 : index
    %3 = vector.load %arg4[%c0_6, %c0_7] : memref<1x512xf32, #tpu.memory_space<vmem>>, vector<1x512xf32>
    %4 = vector.shape_cast %0 : vector<8x8x16xf32> to vector<64x16xf32>
    %cst = arith.constant dense<0.000000e+00> : vector<64x512xf32>
    %5 = tpu.matmul %4, %1, %cst {dimension_numbers = #tpu.dot_dimension_numbers<[1], [0], [0], [1], [0, 0, 1, 1], [], []>} : vector<64x16xf32>, vector<16x512xf32>, vector<64x512xf32> -> vector<64x512xf32>
    %6 = vector.broadcast %3 : vector<1x512xf32> to vector<64x512xf32>
    %7 = arith.addf %5, %6 : vector<64x512xf32>
    %8 = vector.shape_cast %7 : vector<64x512xf32> to vector<8x8x512xf32>
    %9 = vector.extract_strided_slice %8 {offsets = [0, 0, 0], sizes = [8, 1, 512], strides = [1, 1, 1]} : vector<8x8x512xf32> to vector<8x1x512xf32>
    %10 = vector.shape_cast %9 : vector<8x1x512xf32> to vector<8x512xf32>
    %c0_8 = arith.constant 0 : index
    %c0_9 = arith.constant 0 : index
    %c0_10 = arith.constant 0 : index
    %11 = vector.load %arg6[%c0_8, %c0_9, %c0_10] : memref<8x8x512xf32, #tpu.memory_space<vmem>>, vector<1x8x512xf32>
    %12 = vector.shape_cast %11 : vector<1x8x512xf32> to vector<8x512xf32>
    %13 = vector.shape_cast %10 : vector<8x512xf32> to vector<1x8x512xf32>
    tpu.vector_store %arg6[%c0_8, %c0_9, %c0_10], %13 {strides = array<i32>} : memref<8x8x512xf32, #tpu.memory_space<vmem>>, vector<1x8x512xf32>,
    %14 = vector.extract_strided_slice %8 {offsets = [0, 1, 0], sizes = [8, 1, 512], strides = [1, 1, 1]} : vector<8x8x512xf32> to vector<8x1x512xf32>
    %15 = vector.shape_cast %14 : vector<8x1x512xf32> to vector<8x512xf32>
    %c1 = arith.constant 1 : index
    %c0_11 = arith.constant 0 : index
    %c0_12 = arith.constant 0 : index
    %16 = vector.load %arg6[%c1, %c0_11, %c0_12] : memref<8x8x512xf32, #tpu.memory_space<vmem>>, vector<1x8x512xf32>
    %17 = vector.shape_cast %16 : vector<1x8x512xf32> to vector<8x512xf32>
    %18 = vector.shape_cast %15 : vector<8x512xf32> to vector<1x8x512xf32>
    tpu.vector_store %arg6[%c1, %c0_11, %c0_12], %18 {strides = array<i32>} : memref<8x8x512xf32, #tpu.memory_space<vmem>>, vector<1x8x512xf32>,
    %19 = vector.extract_strided_slice %8 {offsets = [0, 2, 0], sizes = [8, 1, 512], strides = [1, 1, 1]} : vector<8x8x512xf32> to vector<8x1x512xf32>
    %20 = vector.shape_cast %19 : vector<8x1x512xf32> to vector<8x512xf32>
    %c2 = arith.constant 2 : index
    %c0_13 = arith.constant 0 : index
    %c0_14 = arith.constant 0 : index
    %21 = vector.load %arg6[%c2, %c0_13, %c0_14] : memref<8x8x512xf32, #tpu.memory_space<vmem>>, vector<1x8x512xf32>
    %22 = vector.shape_cast %21 : vector<1x8x512xf32> to vector<8x512xf32>
    %23 = vector.shape_cast %20 : vector<8x512xf32> to vector<1x8x512xf32>
    tpu.vector_store %arg6[%c2, %c0_13, %c0_14], %23 {strides = array<i32>} : memref<8x8x512xf32, #tpu.memory_space<vmem>>, vector<1x8x512xf32>,
    %24 = vector.extract_strided_slice %8 {offsets = [0, 3, 0], sizes = [8, 1, 512], strides = [1, 1, 1]} : vector<8x8x512xf32> to vector<8x1x512xf32>
    %25 = vector.shape_cast %24 : vector<8x1x512xf32> to vector<8x512xf32>
    %c3 = arith.constant 3 : index
    %c0_15 = arith.constant 0 : index
    %c0_16 = arith.constant 0 : index
    %26 = vector.load %arg6[%c3, %c0_15, %c0_16] : memref<8x8x512xf32, #tpu.memory_space<vmem>>, vector<1x8x512xf32>
    %27 = vector.shape_cast %26 : vector<1x8x512xf32> to vector<8x512xf32>
    %28 = vector.shape_cast %25 : vector<8x512xf32> to vector<1x8x512xf32>
    tpu.vector_store %arg6[%c3, %c0_15, %c0_16], %28 {strides = array<i32>} : memref<8x8x512xf32, #tpu.memory_space<vmem>>, vector<1x8x512xf32>,
    %29 = vector.extract_strided_slice %8 {offsets = [0, 4, 0], sizes = [8, 1, 512], strides = [1, 1, 1]} : vector<8x8x512xf32> to vector<8x1x512xf32>
    %30 = vector.shape_cast %29 : vector<8x1x512xf32> to vector<8x512xf32>
    %c4 = arith.constant 4 : index
    %c0_17 = arith.constant 0 : index
    %c0_18 = arith.constant 0 : index
    %31 = vector.load %arg6[%c4, %c0_17, %c0_18] : memref<8x8x512xf32, #tpu.memory_space<vmem>>, vector<1x8x512xf32>
    %32 = vector.shape_cast %31 : vector<1x8x512xf32> to vector<8x512xf32>
    %33 = vector.shape_cast %30 : vector<8x512xf32> to vector<1x8x512xf32>
    tpu.vector_store %arg6[%c4, %c0_17, %c0_18], %33 {strides = array<i32>} : memref<8x8x512xf32, #tpu.memory_space<vmem>>, vector<1x8x512xf32>,
    %34 = vector.extract_strided_slice %8 {offsets = [0, 5, 0], sizes = [8, 1, 512], strides = [1, 1, 1]} : vector<8x8x512xf32> to vector<8x1x512xf32>
    %35 = vector.shape_cast %34 : vector<8x1x512xf32> to vector<8x512xf32>
    %c5 = arith.constant 5 : index
    %c0_19 = arith.constant 0 : index
    %c0_20 = arith.constant 0 : index
    %36 = vector.load %arg6[%c5, %c0_19, %c0_20] : memref<8x8x512xf32, #tpu.memory_space<vmem>>, vector<1x8x512xf32>
    %37 = vector.shape_cast %36 : vector<1x8x512xf32> to vector<8x512xf32>
    %38 = vector.shape_cast %35 : vector<8x512xf32> to vector<1x8x512xf32>
    tpu.vector_store %arg6[%c5, %c0_19, %c0_20], %38 {strides = array<i32>} : memref<8x8x512xf32, #tpu.memory_space<vmem>>, vector<1x8x512xf32>,
    %39 = vector.extract_strided_slice %8 {offsets = [0, 6, 0], sizes = [8, 1, 512], strides = [1, 1, 1]} : vector<8x8x512xf32> to vector<8x1x512xf32>
    %40 = vector.shape_cast %39 : vector<8x1x512xf32> to vector<8x512xf32>
    %c6 = arith.constant 6 : index
    %c0_21 = arith.constant 0 : index
    %c0_22 = arith.constant 0 : index
    %41 = vector.load %arg6[%c6, %c0_21, %c0_22] : memref<8x8x512xf32, #tpu.memory_space<vmem>>, vector<1x8x512xf32>
    %42 = vector.shape_cast %41 : vector<1x8x512xf32> to vector<8x512xf32>
    %43 = vector.shape_cast %40 : vector<8x512xf32> to vector<1x8x512xf32>
    tpu.vector_store %arg6[%c6, %c0_21, %c0_22], %43 {strides = array<i32>} : memref<8x8x512xf32, #tpu.memory_space<vmem>>, vector<1x8x512xf32>,
    %44 = vector.extract_strided_slice %8 {offsets = [0, 7, 0], sizes = [8, 1, 512], strides = [1, 1, 1]} : vector<8x8x512xf32> to vector<8x1x512xf32>
    %45 = vector.shape_cast %44 : vector<8x1x512xf32> to vector<8x512xf32>
    %c7 = arith.constant 7 : index
    %c0_23 = arith.constant 0 : index
    %c0_24 = arith.constant 0 : index
    %46 = vector.load %arg6[%c7, %c0_23, %c0_24] : memref<8x8x512xf32, #tpu.memory_space<vmem>>, vector<1x8x512xf32>
    %47 = vector.shape_cast %46 : vector<1x8x512xf32> to vector<8x512xf32>
    %48 = vector.shape_cast %45 : vector<8x512xf32> to vector<1x8x512xf32>
    tpu.vector_store %arg6[%c7, %c0_23, %c0_24], %48 {strides = array<i32>} : memref<8x8x512xf32, #tpu.memory_space<vmem>>, vector<1x8x512xf32>,
    %cst_25 = arith.constant 0.000000e+00 : f32
    %49 = vector.broadcast %cst_25 : f32 to vector<8x128xf32>
    %cst_26 = arith.constant 0.000000e+00 : f32
    %50 = vector.broadcast %cst_26 : f32 to vector<8x128xf32>
    %c0_i32 = arith.constant 0 : i32
    %51 = arith.index_cast %c0_i32 : i32 to index
    %c0_27 = arith.constant 0 : index
    %c0_28 = arith.constant 0 : index
    %52 = vector.load %arg6[%51, %c0_27, %c0_28] : memref<8x8x512xf32, #tpu.memory_space<vmem>>, vector<1x8x512xf32>
    %53 = vector.shape_cast %52 : vector<1x8x512xf32> to vector<8x512xf32>
    %cst_29 = arith.constant dense<0.000000e+00> : vector<8x512xf32>
    %54 = tpu.matmul %49, %2, %cst_29 {dimension_numbers = #tpu.dot_dimension_numbers<[1], [0], [0], [1], [0, 0, 1, 1], [], []>} : vector<8x128xf32>, vector<128x512xf32>, vector<8x512xf32> -> vector<8x512xf32>
    %55 = arith.addf %53, %54 : vector<8x512xf32>
    %56 = vector.extract_strided_slice %55 {offsets = [0, 0], sizes = [8, 256], strides = [1, 1]} : vector<8x512xf32> to vector<8x256xf32>
    %cst_30 = arith.constant 5.000000e-01 : f32
    %57 = vector.broadcast %cst_30 : f32 to vector<8x256xf32>
    %58 = arith.mulf %57, %56 : vector<8x256xf32>
    %59 = math.tanh %58 : vector<8x256xf32>
    %cst_31 = arith.constant 1.000000e+00 : f32
    %60 = vector.broadcast %cst_31 : f32 to vector<8x256xf32>
    %61 = arith.addf %60, %59 : vector<8x256xf32>
    %cst_32 = arith.constant 5.000000e-01 : f32
    %62 = vector.broadcast %cst_32 : f32 to vector<8x256xf32>
    %63 = arith.mulf %62, %61 : vector<8x256xf32>
    %64 = vector.extract_strided_slice %63 {offsets = [0, 0], sizes = [8, 128], strides = [1, 1]} : vector<8x256xf32> to vector<8x128xf32>
    %65 = vector.extract_strided_slice %63 {offsets = [0, 128], sizes = [8, 128], strides = [1, 1]} : vector<8x256xf32> to vector<8x128xf32>
    %66 = vector.extract_strided_slice %55 {offsets = [0, 256], sizes = [8, 128], strides = [1, 1]} : vector<8x512xf32> to vector<8x128xf32>
    %67 = math.tanh %66 : vector<8x128xf32>
    %68 = vector.extract_strided_slice %55 {offsets = [0, 384], sizes = [8, 128], strides = [1, 1]} : vector<8x512xf32> to vector<8x128xf32>
    %cst_33 = arith.constant 5.000000e-01 : f32
    %69 = vector.broadcast %cst_33 : f32 to vector<8x128xf32>
    %70 = arith.mulf %69, %68 : vector<8x128xf32>
    %71 = math.tanh %70 : vector<8x128xf32>
    %cst_34 = arith.constant 1.000000e+00 : f32
    %72 = vector.broadcast %cst_34 : f32 to vector<8x128xf32>
    %73 = arith.addf %72, %71 : vector<8x128xf32>
    %cst_35 = arith.constant 5.000000e-01 : f32
    %74 = vector.broadcast %cst_35 : f32 to vector<8x128xf32>
    %75 = arith.mulf %74, %73 : vector<8x128xf32>
    %76 = arith.mulf %65, %50 : vector<8x128xf32>
    %77 = arith.mulf %64, %67 : vector<8x128xf32>
    %78 = arith.addf %76, %77 : vector<8x128xf32>
    %79 = math.tanh %78 : vector<8x128xf32>
    %80 = arith.mulf %75, %79 : vector<8x128xf32>
    %c1_i32 = arith.constant 1 : i32
    %81 = arith.index_cast %c1_i32 : i32 to index
    %c0_36 = arith.constant 0 : index
    %c0_37 = arith.constant 0 : index
    %82 = vector.load %arg6[%81, %c0_36, %c0_37] : memref<8x8x512xf32, #tpu.memory_space<vmem>>, vector<1x8x512xf32>
    %83 = vector.shape_cast %82 : vector<1x8x512xf32> to vector<8x512xf32>
    %cst_38 = arith.constant dense<0.000000e+00> : vector<8x512xf32>
    %84 = tpu.matmul %80, %2, %cst_38 {dimension_numbers = #tpu.dot_dimension_numbers<[1], [0], [0], [1], [0, 0, 1, 1], [], []>} : vector<8x128xf32>, vector<128x512xf32>, vector<8x512xf32> -> vector<8x512xf32>
    %85 = arith.addf %83, %84 : vector<8x512xf32>
    %86 = vector.extract_strided_slice %85 {offsets = [0, 0], sizes = [8, 256], strides = [1, 1]} : vector<8x512xf32> to vector<8x256xf32>
    %cst_39 = arith.constant 5.000000e-01 : f32
    %87 = vector.broadcast %cst_39 : f32 to vector<8x256xf32>
    %88 = arith.mulf %87, %86 : vector<8x256xf32>
    %89 = math.tanh %88 : vector<8x256xf32>
    %cst_40 = arith.constant 1.000000e+00 : f32
    %90 = vector.broadcast %cst_40 : f32 to vector<8x256xf32>
    %91 = arith.addf %90, %89 : vector<8x256xf32>
    %cst_41 = arith.constant 5.000000e-01 : f32
    %92 = vector.broadcast %cst_41 : f32 to vector<8x256xf32>
    %93 = arith.mulf %92, %91 : vector<8x256xf32>
    %94 = vector.extract_strided_slice %93 {offsets = [0, 0], sizes = [8, 128], strides = [1, 1]} : vector<8x256xf32> to vector<8x128xf32>
    %95 = vector.extract_strided_slice %93 {offsets = [0, 128], sizes = [8, 128], strides = [1, 1]} : vector<8x256xf32> to vector<8x128xf32>
    %96 = vector.extract_strided_slice %85 {offsets = [0, 256], sizes = [8, 128], strides = [1, 1]} : vector<8x512xf32> to vector<8x128xf32>
    %97 = math.tanh %96 : vector<8x128xf32>
    %98 = vector.extract_strided_slice %85 {offsets = [0, 384], sizes = [8, 128], strides = [1, 1]} : vector<8x512xf32> to vector<8x128xf32>
    %cst_42 = arith.constant 5.000000e-01 : f32
    %99 = vector.broadcast %cst_42 : f32 to vector<8x128xf32>
    %100 = arith.mulf %99, %98 : vector<8x128xf32>
    %101 = math.tanh %100 : vector<8x128xf32>
    %cst_43 = arith.constant 1.000000e+00 : f32
    %102 = vector.broadcast %cst_43 : f32 to vector<8x128xf32>
    %103 = arith.addf %102, %101 : vector<8x128xf32>
    %cst_44 = arith.constant 5.000000e-01 : f32
    %104 = vector.broadcast %cst_44 : f32 to vector<8x128xf32>
    %105 = arith.mulf %104, %103 : vector<8x128xf32>
    %106 = arith.mulf %95, %78 : vector<8x128xf32>
    %107 = arith.mulf %94, %97 : vector<8x128xf32>
    %108 = arith.addf %106, %107 : vector<8x128xf32>
    %109 = math.tanh %108 : vector<8x128xf32>
    %110 = arith.mulf %105, %109 : vector<8x128xf32>
    %c2_i32 = arith.constant 2 : i32
    %111 = arith.index_cast %c2_i32 : i32 to index
    %c0_45 = arith.constant 0 : index
    %c0_46 = arith.constant 0 : index
    %112 = vector.load %arg6[%111, %c0_45, %c0_46] : memref<8x8x512xf32, #tpu.memory_space<vmem>>, vector<1x8x512xf32>
    %113 = vector.shape_cast %112 : vector<1x8x512xf32> to vector<8x512xf32>
    %cst_47 = arith.constant dense<0.000000e+00> : vector<8x512xf32>
    %114 = tpu.matmul %110, %2, %cst_47 {dimension_numbers = #tpu.dot_dimension_numbers<[1], [0], [0], [1], [0, 0, 1, 1], [], []>} : vector<8x128xf32>, vector<128x512xf32>, vector<8x512xf32> -> vector<8x512xf32>
    %115 = arith.addf %113, %114 : vector<8x512xf32>
    %116 = vector.extract_strided_slice %115 {offsets = [0, 0], sizes = [8, 256], strides = [1, 1]} : vector<8x512xf32> to vector<8x256xf32>
    %cst_48 = arith.constant 5.000000e-01 : f32
    %117 = vector.broadcast %cst_48 : f32 to vector<8x256xf32>
    %118 = arith.mulf %117, %116 : vector<8x256xf32>
    %119 = math.tanh %118 : vector<8x256xf32>
    %cst_49 = arith.constant 1.000000e+00 : f32
    %120 = vector.broadcast %cst_49 : f32 to vector<8x256xf32>
    %121 = arith.addf %120, %119 : vector<8x256xf32>
    %cst_50 = arith.constant 5.000000e-01 : f32
    %122 = vector.broadcast %cst_50 : f32 to vector<8x256xf32>
    %123 = arith.mulf %122, %121 : vector<8x256xf32>
    %124 = vector.extract_strided_slice %123 {offsets = [0, 0], sizes = [8, 128], strides = [1, 1]} : vector<8x256xf32> to vector<8x128xf32>
    %125 = vector.extract_strided_slice %123 {offsets = [0, 128], sizes = [8, 128], strides = [1, 1]} : vector<8x256xf32> to vector<8x128xf32>
    %126 = vector.extract_strided_slice %115 {offsets = [0, 256], sizes = [8, 128], strides = [1, 1]} : vector<8x512xf32> to vector<8x128xf32>
    %127 = math.tanh %126 : vector<8x128xf32>
    %128 = vector.extract_strided_slice %115 {offsets = [0, 384], sizes = [8, 128], strides = [1, 1]} : vector<8x512xf32> to vector<8x128xf32>
    %cst_51 = arith.constant 5.000000e-01 : f32
    %129 = vector.broadcast %cst_51 : f32 to vector<8x128xf32>
    %130 = arith.mulf %129, %128 : vector<8x128xf32>
    %131 = math.tanh %130 : vector<8x128xf32>
    %cst_52 = arith.constant 1.000000e+00 : f32
    %132 = vector.broadcast %cst_52 : f32 to vector<8x128xf32>
    %133 = arith.addf %132, %131 : vector<8x128xf32>
    %cst_53 = arith.constant 5.000000e-01 : f32
    %134 = vector.broadcast %cst_53 : f32 to vector<8x128xf32>
    %135 = arith.mulf %134, %133 : vector<8x128xf32>
    %136 = arith.mulf %125, %108 : vector<8x128xf32>
    %137 = arith.mulf %124, %127 : vector<8x128xf32>
    %138 = arith.addf %136, %137 : vector<8x128xf32>
    %139 = math.tanh %138 : vector<8x128xf32>
    %140 = arith.mulf %135, %139 : vector<8x128xf32>
    %c3_i32 = arith.constant 3 : i32
    %141 = arith.index_cast %c3_i32 : i32 to index
    %c0_54 = arith.constant 0 : index
    %c0_55 = arith.constant 0 : index
    %142 = vector.load %arg6[%141, %c0_54, %c0_55] : memref<8x8x512xf32, #tpu.memory_space<vmem>>, vector<1x8x512xf32>
    %143 = vector.shape_cast %142 : vector<1x8x512xf32> to vector<8x512xf32>
    %cst_56 = arith.constant dense<0.000000e+00> : vector<8x512xf32>
    %144 = tpu.matmul %140, %2, %cst_56 {dimension_numbers = #tpu.dot_dimension_numbers<[1], [0], [0], [1], [0, 0, 1, 1], [], []>} : vector<8x128xf32>, vector<128x512xf32>, vector<8x512xf32> -> vector<8x512xf32>
    %145 = arith.addf %143, %144 : vector<8x512xf32>
    %146 = vector.extract_strided_slice %145 {offsets = [0, 0], sizes = [8, 256], strides = [1, 1]} : vector<8x512xf32> to vector<8x256xf32>
    %cst_57 = arith.constant 5.000000e-01 : f32
    %147 = vector.broadcast %cst_57 : f32 to vector<8x256xf32>
    %148 = arith.mulf %147, %146 : vector<8x256xf32>
    %149 = math.tanh %148 : vector<8x256xf32>
    %cst_58 = arith.constant 1.000000e+00 : f32
    %150 = vector.broadcast %cst_58 : f32 to vector<8x256xf32>
    %151 = arith.addf %150, %149 : vector<8x256xf32>
    %cst_59 = arith.constant 5.000000e-01 : f32
    %152 = vector.broadcast %cst_59 : f32 to vector<8x256xf32>
    %153 = arith.mulf %152, %151 : vector<8x256xf32>
    %154 = vector.extract_strided_slice %153 {offsets = [0, 0], sizes = [8, 128], strides = [1, 1]} : vector<8x256xf32> to vector<8x128xf32>
    %155 = vector.extract_strided_slice %153 {offsets = [0, 128], sizes = [8, 128], strides = [1, 1]} : vector<8x256xf32> to vector<8x128xf32>
    %156 = vector.extract_strided_slice %145 {offsets = [0, 256], sizes = [8, 128], strides = [1, 1]} : vector<8x512xf32> to vector<8x128xf32>
    %157 = math.tanh %156 : vector<8x128xf32>
    %158 = vector.extract_strided_slice %145 {offsets = [0, 384], sizes = [8, 128], strides = [1, 1]} : vector<8x512xf32> to vector<8x128xf32>
    %cst_60 = arith.constant 5.000000e-01 : f32
    %159 = vector.broadcast %cst_60 : f32 to vector<8x128xf32>
    %160 = arith.mulf %159, %158 : vector<8x128xf32>
    %161 = math.tanh %160 : vector<8x128xf32>
    %cst_61 = arith.constant 1.000000e+00 : f32
    %162 = vector.broadcast %cst_61 : f32 to vector<8x128xf32>
    %163 = arith.addf %162, %161 : vector<8x128xf32>
    %cst_62 = arith.constant 5.000000e-01 : f32
    %164 = vector.broadcast %cst_62 : f32 to vector<8x128xf32>
    %165 = arith.mulf %164, %163 : vector<8x128xf32>
    %166 = arith.mulf %155, %138 : vector<8x128xf32>
    %167 = arith.mulf %154, %157 : vector<8x128xf32>
    %168 = arith.addf %166, %167 : vector<8x128xf32>
    %169 = math.tanh %168 : vector<8x128xf32>
    %170 = arith.mulf %165, %169 : vector<8x128xf32>
    %c4_i32 = arith.constant 4 : i32
    %171 = arith.index_cast %c4_i32 : i32 to index
    %c0_63 = arith.constant 0 : index
    %c0_64 = arith.constant 0 : index
    %172 = vector.load %arg6[%171, %c0_63, %c0_64] : memref<8x8x512xf32, #tpu.memory_space<vmem>>, vector<1x8x512xf32>
    %173 = vector.shape_cast %172 : vector<1x8x512xf32> to vector<8x512xf32>
    %cst_65 = arith.constant dense<0.000000e+00> : vector<8x512xf32>
    %174 = tpu.matmul %170, %2, %cst_65 {dimension_numbers = #tpu.dot_dimension_numbers<[1], [0], [0], [1], [0, 0, 1, 1], [], []>} : vector<8x128xf32>, vector<128x512xf32>, vector<8x512xf32> -> vector<8x512xf32>
    %175 = arith.addf %173, %174 : vector<8x512xf32>
    %176 = vector.extract_strided_slice %175 {offsets = [0, 0], sizes = [8, 256], strides = [1, 1]} : vector<8x512xf32> to vector<8x256xf32>
    %cst_66 = arith.constant 5.000000e-01 : f32
    %177 = vector.broadcast %cst_66 : f32 to vector<8x256xf32>
    %178 = arith.mulf %177, %176 : vector<8x256xf32>
    %179 = math.tanh %178 : vector<8x256xf32>
    %cst_67 = arith.constant 1.000000e+00 : f32
    %180 = vector.broadcast %cst_67 : f32 to vector<8x256xf32>
    %181 = arith.addf %180, %179 : vector<8x256xf32>
    %cst_68 = arith.constant 5.000000e-01 : f32
    %182 = vector.broadcast %cst_68 : f32 to vector<8x256xf32>
    %183 = arith.mulf %182, %181 : vector<8x256xf32>
    %184 = vector.extract_strided_slice %183 {offsets = [0, 0], sizes = [8, 128], strides = [1, 1]} : vector<8x256xf32> to vector<8x128xf32>
    %185 = vector.extract_strided_slice %183 {offsets = [0, 128], sizes = [8, 128], strides = [1, 1]} : vector<8x256xf32> to vector<8x128xf32>
    %186 = vector.extract_strided_slice %175 {offsets = [0, 256], sizes = [8, 128], strides = [1, 1]} : vector<8x512xf32> to vector<8x128xf32>
    %187 = math.tanh %186 : vector<8x128xf32>
    %188 = vector.extract_strided_slice %175 {offsets = [0, 384], sizes = [8, 128], strides = [1, 1]} : vector<8x512xf32> to vector<8x128xf32>
    %cst_69 = arith.constant 5.000000e-01 : f32
    %189 = vector.broadcast %cst_69 : f32 to vector<8x128xf32>
    %190 = arith.mulf %189, %188 : vector<8x128xf32>
    %191 = math.tanh %190 : vector<8x128xf32>
    %cst_70 = arith.constant 1.000000e+00 : f32
    %192 = vector.broadcast %cst_70 : f32 to vector<8x128xf32>
    %193 = arith.addf %192, %191 : vector<8x128xf32>
    %cst_71 = arith.constant 5.000000e-01 : f32
    %194 = vector.broadcast %cst_71 : f32 to vector<8x128xf32>
    %195 = arith.mulf %194, %193 : vector<8x128xf32>
    %196 = arith.mulf %185, %168 : vector<8x128xf32>
    %197 = arith.mulf %184, %187 : vector<8x128xf32>
    %198 = arith.addf %196, %197 : vector<8x128xf32>
    %199 = math.tanh %198 : vector<8x128xf32>
    %200 = arith.mulf %195, %199 : vector<8x128xf32>
    %c5_i32 = arith.constant 5 : i32
    %201 = arith.index_cast %c5_i32 : i32 to index
    %c0_72 = arith.constant 0 : index
    %c0_73 = arith.constant 0 : index
    %202 = vector.load %arg6[%201, %c0_72, %c0_73] : memref<8x8x512xf32, #tpu.memory_space<vmem>>, vector<1x8x512xf32>
    %203 = vector.shape_cast %202 : vector<1x8x512xf32> to vector<8x512xf32>
    %cst_74 = arith.constant dense<0.000000e+00> : vector<8x512xf32>
    %204 = tpu.matmul %200, %2, %cst_74 {dimension_numbers = #tpu.dot_dimension_numbers<[1], [0], [0], [1], [0, 0, 1, 1], [], []>} : vector<8x128xf32>, vector<128x512xf32>, vector<8x512xf32> -> vector<8x512xf32>
    %205 = arith.addf %203, %204 : vector<8x512xf32>
    %206 = vector.extract_strided_slice %205 {offsets = [0, 0], sizes = [8, 256], strides = [1, 1]} : vector<8x512xf32> to vector<8x256xf32>
    %cst_75 = arith.constant 5.000000e-01 : f32
    %207 = vector.broadcast %cst_75 : f32 to vector<8x256xf32>
    %208 = arith.mulf %207, %206 : vector<8x256xf32>
    %209 = math.tanh %208 : vector<8x256xf32>
    %cst_76 = arith.constant 1.000000e+00 : f32
    %210 = vector.broadcast %cst_76 : f32 to vector<8x256xf32>
    %211 = arith.addf %210, %209 : vector<8x256xf32>
    %cst_77 = arith.constant 5.000000e-01 : f32
    %212 = vector.broadcast %cst_77 : f32 to vector<8x256xf32>
    %213 = arith.mulf %212, %211 : vector<8x256xf32>
    %214 = vector.extract_strided_slice %213 {offsets = [0, 0], sizes = [8, 128], strides = [1, 1]} : vector<8x256xf32> to vector<8x128xf32>
    %215 = vector.extract_strided_slice %213 {offsets = [0, 128], sizes = [8, 128], strides = [1, 1]} : vector<8x256xf32> to vector<8x128xf32>
    %216 = vector.extract_strided_slice %205 {offsets = [0, 256], sizes = [8, 128], strides = [1, 1]} : vector<8x512xf32> to vector<8x128xf32>
    %217 = math.tanh %216 : vector<8x128xf32>
    %218 = vector.extract_strided_slice %205 {offsets = [0, 384], sizes = [8, 128], strides = [1, 1]} : vector<8x512xf32> to vector<8x128xf32>
    %cst_78 = arith.constant 5.000000e-01 : f32
    %219 = vector.broadcast %cst_78 : f32 to vector<8x128xf32>
    %220 = arith.mulf %219, %218 : vector<8x128xf32>
    %221 = math.tanh %220 : vector<8x128xf32>
    %cst_79 = arith.constant 1.000000e+00 : f32
    %222 = vector.broadcast %cst_79 : f32 to vector<8x128xf32>
    %223 = arith.addf %222, %221 : vector<8x128xf32>
    %cst_80 = arith.constant 5.000000e-01 : f32
    %224 = vector.broadcast %cst_80 : f32 to vector<8x128xf32>
    %225 = arith.mulf %224, %223 : vector<8x128xf32>
    %226 = arith.mulf %215, %198 : vector<8x128xf32>
    %227 = arith.mulf %214, %217 : vector<8x128xf32>
    %228 = arith.addf %226, %227 : vector<8x128xf32>
    %229 = math.tanh %228 : vector<8x128xf32>
    %230 = arith.mulf %225, %229 : vector<8x128xf32>
    %c6_i32 = arith.constant 6 : i32
    %231 = arith.index_cast %c6_i32 : i32 to index
    %c0_81 = arith.constant 0 : index
    %c0_82 = arith.constant 0 : index
    %232 = vector.load %arg6[%231, %c0_81, %c0_82] : memref<8x8x512xf32, #tpu.memory_space<vmem>>, vector<1x8x512xf32>
    %233 = vector.shape_cast %232 : vector<1x8x512xf32> to vector<8x512xf32>
    %cst_83 = arith.constant dense<0.000000e+00> : vector<8x512xf32>
    %234 = tpu.matmul %230, %2, %cst_83 {dimension_numbers = #tpu.dot_dimension_numbers<[1], [0], [0], [1], [0, 0, 1, 1], [], []>} : vector<8x128xf32>, vector<128x512xf32>, vector<8x512xf32> -> vector<8x512xf32>
    %235 = arith.addf %233, %234 : vector<8x512xf32>
    %236 = vector.extract_strided_slice %235 {offsets = [0, 0], sizes = [8, 256], strides = [1, 1]} : vector<8x512xf32> to vector<8x256xf32>
    %cst_84 = arith.constant 5.000000e-01 : f32
    %237 = vector.broadcast %cst_84 : f32 to vector<8x256xf32>
    %238 = arith.mulf %237, %236 : vector<8x256xf32>
    %239 = math.tanh %238 : vector<8x256xf32>
    %cst_85 = arith.constant 1.000000e+00 : f32
    %240 = vector.broadcast %cst_85 : f32 to vector<8x256xf32>
    %241 = arith.addf %240, %239 : vector<8x256xf32>
    %cst_86 = arith.constant 5.000000e-01 : f32
    %242 = vector.broadcast %cst_86 : f32 to vector<8x256xf32>
    %243 = arith.mulf %242, %241 : vector<8x256xf32>
    %244 = vector.extract_strided_slice %243 {offsets = [0, 0], sizes = [8, 128], strides = [1, 1]} : vector<8x256xf32> to vector<8x128xf32>
    %245 = vector.extract_strided_slice %243 {offsets = [0, 128], sizes = [8, 128], strides = [1, 1]} : vector<8x256xf32> to vector<8x128xf32>
    %246 = vector.extract_strided_slice %235 {offsets = [0, 256], sizes = [8, 128], strides = [1, 1]} : vector<8x512xf32> to vector<8x128xf32>
    %247 = math.tanh %246 : vector<8x128xf32>
    %248 = vector.extract_strided_slice %235 {offsets = [0, 384], sizes = [8, 128], strides = [1, 1]} : vector<8x512xf32> to vector<8x128xf32>
    %cst_87 = arith.constant 5.000000e-01 : f32
    %249 = vector.broadcast %cst_87 : f32 to vector<8x128xf32>
    %250 = arith.mulf %249, %248 : vector<8x128xf32>
    %251 = math.tanh %250 : vector<8x128xf32>
    %cst_88 = arith.constant 1.000000e+00 : f32
    %252 = vector.broadcast %cst_88 : f32 to vector<8x128xf32>
    %253 = arith.addf %252, %251 : vector<8x128xf32>
    %cst_89 = arith.constant 5.000000e-01 : f32
    %254 = vector.broadcast %cst_89 : f32 to vector<8x128xf32>
    %255 = arith.mulf %254, %253 : vector<8x128xf32>
    %256 = arith.mulf %245, %228 : vector<8x128xf32>
    %257 = arith.mulf %244, %247 : vector<8x128xf32>
    %258 = arith.addf %256, %257 : vector<8x128xf32>
    %259 = math.tanh %258 : vector<8x128xf32>
    %260 = arith.mulf %255, %259 : vector<8x128xf32>
    %c7_i32 = arith.constant 7 : i32
    %261 = arith.index_cast %c7_i32 : i32 to index
    %c0_90 = arith.constant 0 : index
    %c0_91 = arith.constant 0 : index
    %262 = vector.load %arg6[%261, %c0_90, %c0_91] : memref<8x8x512xf32, #tpu.memory_space<vmem>>, vector<1x8x512xf32>
    %263 = vector.shape_cast %262 : vector<1x8x512xf32> to vector<8x512xf32>
    %cst_92 = arith.constant dense<0.000000e+00> : vector<8x512xf32>
    %264 = tpu.matmul %260, %2, %cst_92 {dimension_numbers = #tpu.dot_dimension_numbers<[1], [0], [0], [1], [0, 0, 1, 1], [], []>} : vector<8x128xf32>, vector<128x512xf32>, vector<8x512xf32> -> vector<8x512xf32>
    %265 = arith.addf %263, %264 : vector<8x512xf32>
    %266 = vector.extract_strided_slice %265 {offsets = [0, 0], sizes = [8, 256], strides = [1, 1]} : vector<8x512xf32> to vector<8x256xf32>
    %cst_93 = arith.constant 5.000000e-01 : f32
    %267 = vector.broadcast %cst_93 : f32 to vector<8x256xf32>
    %268 = arith.mulf %267, %266 : vector<8x256xf32>
    %269 = math.tanh %268 : vector<8x256xf32>
    %cst_94 = arith.constant 1.000000e+00 : f32
    %270 = vector.broadcast %cst_94 : f32 to vector<8x256xf32>
    %271 = arith.addf %270, %269 : vector<8x256xf32>
    %cst_95 = arith.constant 5.000000e-01 : f32
    %272 = vector.broadcast %cst_95 : f32 to vector<8x256xf32>
    %273 = arith.mulf %272, %271 : vector<8x256xf32>
    %274 = vector.extract_strided_slice %273 {offsets = [0, 0], sizes = [8, 128], strides = [1, 1]} : vector<8x256xf32> to vector<8x128xf32>
    %275 = vector.extract_strided_slice %273 {offsets = [0, 128], sizes = [8, 128], strides = [1, 1]} : vector<8x256xf32> to vector<8x128xf32>
    %276 = vector.extract_strided_slice %265 {offsets = [0, 256], sizes = [8, 128], strides = [1, 1]} : vector<8x512xf32> to vector<8x128xf32>
    %277 = math.tanh %276 : vector<8x128xf32>
    %278 = vector.extract_strided_slice %265 {offsets = [0, 384], sizes = [8, 128], strides = [1, 1]} : vector<8x512xf32> to vector<8x128xf32>
    %cst_96 = arith.constant 5.000000e-01 : f32
    %279 = vector.broadcast %cst_96 : f32 to vector<8x128xf32>
    %280 = arith.mulf %279, %278 : vector<8x128xf32>
    %281 = math.tanh %280 : vector<8x128xf32>
    %cst_97 = arith.constant 1.000000e+00 : f32
    %282 = vector.broadcast %cst_97 : f32 to vector<8x128xf32>
    %283 = arith.addf %282, %281 : vector<8x128xf32>
    %cst_98 = arith.constant 5.000000e-01 : f32
    %284 = vector.broadcast %cst_98 : f32 to vector<8x128xf32>
    %285 = arith.mulf %284, %283 : vector<8x128xf32>
    %286 = arith.mulf %275, %258 : vector<8x128xf32>
    %287 = arith.mulf %274, %277 : vector<8x128xf32>
    %288 = arith.addf %286, %287 : vector<8x128xf32>
    %289 = math.tanh %288 : vector<8x128xf32>
    %290 = arith.mulf %285, %289 : vector<8x128xf32>
    %c8_i32 = arith.constant 8 : i32
    %c0_99 = arith.constant 0 : index
    %c0_100 = arith.constant 0 : index
    %291 = vector.load %arg5[%c0_99, %c0_100] : memref<8x128xf32, #tpu.memory_space<vmem>>, vector<8x128xf32>
    tpu.vector_store %arg5[%c0_99, %c0_100], %290 {strides = array<i32>} : memref<8x128xf32, #tpu.memory_space<vmem>>, vector<8x128xf32>,
    return
  }
  func.func @transform_0(%arg0: i32) -> (i32, i32, i32) {
    %c0_i32 = arith.constant 0 : i32
    %c0_i32_0 = arith.constant 0 : i32
    %c0_i32_1 = arith.constant 0 : i32
    return %arg0, %c0_i32, %c0_i32_0 : i32, i32, i32
  }
  func.func @transform_1(%arg0: i32) -> (i32, i32) {
    %c0_i32 = arith.constant 0 : i32
    %c0_i32_0 = arith.constant 0 : i32
    %c0_i32_1 = arith.constant 0 : i32
    return %c0_i32, %c0_i32_0 : i32, i32
  }
  func.func @transform_2(%arg0: i32) -> (i32, i32) {
    %c0_i32 = arith.constant 0 : i32
    %c0_i32_0 = arith.constant 0 : i32
    %c0_i32_1 = arith.constant 0 : i32
    return %c0_i32, %c0_i32_0 : i32, i32
  }
  func.func @transform_3(%arg0: i32) -> (i32, i32) {
    %c0_i32 = arith.constant 0 : i32
    %c0_i32_0 = arith.constant 0 : i32
    %c0_i32_1 = arith.constant 0 : i32
    return %c0_i32, %c0_i32_0 : i32, i32
  }
  func.func @transform_4(%arg0: i32) -> (i32, i32) {
    %c0_i32 = arith.constant 0 : i32
    %c0_i32_0 = arith.constant 0 : i32
    return %arg0, %c0_i32 : i32, i32
  }
}

</mosaic_0001>

<llo_original>
// kernel: tpu_custom_call.1
$region0: #{tpu_custom_call.1}
  #allocation0 [shape = 'u32[]', space=smem, size = 0x4, offset = 0x4, fixed_abs, tag = 'smem constant byte address 0x4 - core index']
  #allocation1 [shape = 'u32[144,128]{1,0:T(1,128)}', space=vmem, size = 0x12000, scoped, tag = 'internal scratch']
  #allocation2 [shape = 'f32[8,8,512]{2,1,0:T(8,128)}', space=vmem, size = 0x20000, scoped, tag = 'scratch operand']
  %s0 = inlined_call_operand.hbm [shape: f32[8,8,16], index: 0, kind: input, shape index: {}]
  %s1 = inlined_call_operand.hbm [shape: f32[16,512], index: 1, kind: input, shape index: {}]
  %s2 = inlined_call_operand.hbm [shape: f32[128,512], index: 2, kind: input, shape index: {}]
  %s3 = inlined_call_operand.vmem [shape: f32[1,512], index: 3, kind: input, shape index: {}]
  %s4 = inlined_call_operand.hbm [shape: f32[8,128], index: 4, kind: output, shape index: {}]
  %s5 = sld [smem:[#allocation0]]
  $region38: #{tpu_custom_call.1} parent=0
    _
  %s7 = ssub.s32 1, %s5
  %s8 = scalar_select 0, %s7, %s5
  $region1: #{tpu_custom_call.1} parent=0
    #allocation3 [shape = 'u8[32768]{0}', space=vmem, size = 0x8000, scoped, tag = 'input window, operand 0, single buffered']
    #allocation4 [shape = 's32[1]{0}', space=sflag, size = 0x4, scoped, tag = 'scoped memory for tpu_custom_call.1']
    #allocation5 [shape = 's32[1]{0}', space=sflag, size = 0x4, scoped, tag = 'scoped memory for tpu_custom_call.1']
    #allocation6 [shape = 'u8[32768]{0}', space=vmem, size = 0x8000, scoped, tag = 'input window, operand 1, single buffered']
    #allocation7 [shape = 's32[1]{0}', space=sflag, size = 0x4, scoped, tag = 'scoped memory for tpu_custom_call.1']
    #allocation8 [shape = 'u8[262144]{0}', space=vmem, size = 0x40000, scoped, tag = 'input window, operand 2, single buffered']
    #allocation9 [shape = 'u8[4096]{0}', space=vmem, size = 0x1000, scoped, tag = 'output window, operand 0, single buffered']
    %9 = vsyncpa [#allocation4], 0
    %10 = vsyncpa [#allocation7], 0
    %11 = vsyncpa [#allocation5], 0
    // Predicated region
    $region2: #{tpu_custom_call.1} parent=1 // pred_check
      _
    $region3: #{tpu_custom_call.1} parent=1 // pred_check_branch
      %13 = sbr.rel (0) target = $region5
    $region4: #{tpu_custom_call.1} parent=1 // pred_region
      %s15 = ssub.s32 1024, 1024
      %16 = vsyncadd [#allocation4], %s15
      %s17 = sshll.u32 [#allocation3], 4
      %s18 = int_to_ptr.vmem [resolvable:$true] %s17
      %23 = dma.hbm_to_vmem [thread:$0]  %s0, 1024, %s18, [#allocation4], 128, 128, 8
    $region5: #{tpu_custom_call.1} parent=1 // pred_fallthru
      _
    // Predicated region
    $region6: #{tpu_custom_call.1} parent=1 // pred_check
      _
    $region7: #{tpu_custom_call.1} parent=1 // pred_check_branch
      %25 = sbr.rel (0) target = $region9
    $region8: #{tpu_custom_call.1} parent=1 // pred_region
      %s27 = ssub.s32 1024, 1024
      %28 = vsyncadd [#allocation7], %s27
      %s29 = sshll.u32 [#allocation6], 4
      %s30 = int_to_ptr.vmem [resolvable:$true] %s29
      %35 = dma.hbm_to_vmem [thread:$0]  %s1, 1024, %s30, [#allocation7], 512, 512, 32
    $region9: #{tpu_custom_call.1} parent=1 // pred_fallthru
      _
    // Predicated region
    $region10: #{tpu_custom_call.1} parent=1 // pred_check
      _
    $region11: #{tpu_custom_call.1} parent=1 // pred_check_branch
      %37 = sbr.rel (0) target = $region13
    $region12: #{tpu_custom_call.1} parent=1 // pred_region
      %s39 = ssub.s32 8192, 8192
      %40 = vsyncadd [#allocation7], %s39
      %s41 = sshll.u32 [#allocation8], 4
      %s42 = int_to_ptr.vmem [resolvable:$true] %s41
      %47 = dma.hbm_to_vmem [thread:$0]  %s2, 8192, %s42, [#allocation7], 512, 512, 32
    $region13: #{tpu_custom_call.1} parent=1 // pred_fallthru
      _
    // Predicated region
    $region14: #{tpu_custom_call.1} parent=1 // pred_check
      _
    $region15: #{tpu_custom_call.1} parent=1 // pred_check_branch
      %49 = sbr.rel (0) target = $region17
    $region16: #{tpu_custom_call.1} parent=1 // pred_region
      _
    $region17: #{tpu_custom_call.1} parent=1 // pred_fallthru
      _
    // Predicated region
    $region18: #{tpu_custom_call.1} parent=1 // pred_check
      _
    $region19: #{tpu_custom_call.1} parent=1 // pred_check_branch
      %51 = sbr.rel (0) target = $region21
    $region20: #{tpu_custom_call.1} parent=1 // pred_region
      %52 = dma.done [#allocation4], 1024
    $region21: #{tpu_custom_call.1} parent=1 // pred_fallthru
      _
    // Predicated region
    $region22: #{tpu_custom_call.1} parent=1 // pred_check
      _
    $region23: #{tpu_custom_call.1} parent=1 // pred_check_branch
      %54 = sbr.rel (0) target = $region25
    $region24: #{tpu_custom_call.1} parent=1 // pred_region
      %55 = dma.done [#allocation7], 1024
    $region25: #{tpu_custom_call.1} parent=1 // pred_fallthru
      _
    // Predicated region
    $region26: #{tpu_custom_call.1} parent=1 // pred_check
      _
    $region27: #{tpu_custom_call.1} parent=1 // pred_check_branch
      %57 = sbr.rel (0) target = $region29
    $region28: #{tpu_custom_call.1} parent=1 // pred_region
      %58 = dma.done [#allocation7], 8192
    $region29: #{tpu_custom_call.1} parent=1 // pred_fallthru
      _
    %v59 = vld [vmem:[#allocation3] sm:$0xff]
    %v60 = vld [vmem:[#allocation3 + $0x8] sm:$0xff]
    %v61 = vld [vmem:[#allocation3 + $0x10] sm:$0xff]
    %v62 = vld [vmem:[#allocation3 + $0x18] sm:$0xff]
    %v63 = vld [vmem:[#allocation3 + $0x20] sm:$0xff]
    %v64 = vld [vmem:[#allocation3 + $0x28] sm:$0xff]
    %v65 = vld [vmem:[#allocation3 + $0x30] sm:$0xff]
    %v66 = vld [vmem:[#allocation3 + $0x38] sm:$0xff]
    %v67 = vld [vmem:[#allocation6] sm:$0xff]
    %v68 = vld [vmem:[#allocation6 + $0x8] sm:$0xff]
    %v69 = vld [vmem:[#allocation6 + $0x10] sm:$0xff]
    %v70 = vld [vmem:[#allocation6 + $0x18] sm:$0xff]
    %v71 = vld [vmem:[#allocation6 + $0x20] sm:$0xff]
    %v72 = vld [vmem:[#allocation6 + $0x28] sm:$0xff]
    %v73 = vld [vmem:[#allocation6 + $0x30] sm:$0xff]
    %v74 = vld [vmem:[#allocation6 + $0x38] sm:$0xff]
    %v75 = vld [vmem:[#allocation8] sm:$0xff]
    %v76 = vld [vmem:[#allocation8 + $0x8] sm:$0xff]
    %v77 = vld [vmem:[#allocation8 + $0x10] sm:$0xff]
    %v78 = vld [vmem:[#allocation8 + $0x18] sm:$0xff]
    %v79 = vld [vmem:[#allocation8 + $0x20] sm:$0xff]
    %v80 = vld [vmem:[#allocation8 + $0x28] sm:$0xff]
    %v81 = vld [vmem:[#allocation8 + $0x30] sm:$0xff]
    %v82 = vld [vmem:[#allocation8 + $0x38] sm:$0xff]
    %v83 = vld [vmem:[#allocation8 + $0x40] sm:$0xff]
    %v84 = vld [vmem:[#allocation8 + $0x48] sm:$0xff]
    %v85 = vld [vmem:[#allocation8 + $0x50] sm:$0xff]
    %v86 = vld [vmem:[#allocation8 + $0x58] sm:$0xff]
    %v87 = vld [vmem:[#allocation8 + $0x60] sm:$0xff]
    %v88 = vld [vmem:[#allocation8 + $0x68] sm:$0xff]
    %v89 = vld [vmem:[#allocation8 + $0x70] sm:$0xff]
    %v90 = vld [vmem:[#allocation8 + $0x78] sm:$0xff]
    %v91 = vld [vmem:[#allocation8 + $0x80] sm:$0xff]
    %v92 = vld [vmem:[#allocation8 + $0x88] sm:$0xff]
    %v93 = vld [vmem:[#allocation8 + $0x90] sm:$0xff]
    %v94 = vld [vmem:[#allocation8 + $0x98] sm:$0xff]
    %v95 = vld [vmem:[#allocation8 + $0xa0] sm:$0xff]
    %v96 = vld [vmem:[#allocation8 + $0xa8] sm:$0xff]
    %v97 = vld [vmem:[#allocation8 + $0xb0] sm:$0xff]
    %v98 = vld [vmem:[#allocation8 + $0xb8] sm:$0xff]
    %v99 = vld [vmem:[#allocation8 + $0xc0] sm:$0xff]
    %v100 = vld [vmem:[#allocation8 + $0xc8] sm:$0xff]
    %v101 = vld [vmem:[#allocation8 + $0xd0] sm:$0xff]
    %v102 = vld [vmem:[#allocation8 + $0xd8] sm:$0xff]
    %v103 = vld [vmem:[#allocation8 + $0xe0] sm:$0xff]
    %v104 = vld [vmem:[#allocation8 + $0xe8] sm:$0xff]
    %v105 = vld [vmem:[#allocation8 + $0xf0] sm:$0xff]
    %v106 = vld [vmem:[#allocation8 + $0xf8] sm:$0xff]
    %v107 = vld [vmem:[#allocation8 + $0x100] sm:$0xff]
    %v108 = vld [vmem:[#allocation8 + $0x108] sm:$0xff]
    %v109 = vld [vmem:[#allocation8 + $0x110] sm:$0xff]
    %v110 = vld [vmem:[#allocation8 + $0x118] sm:$0xff]
    %v111 = vld [vmem:[#allocation8 + $0x120] sm:$0xff]
    %v112 = vld [vmem:[#allocation8 + $0x128] sm:$0xff]
    %v113 = vld [vmem:[#allocation8 + $0x130] sm:$0xff]
    %v114 = vld [vmem:[#allocation8 + $0x138] sm:$0xff]
    %v115 = vld [vmem:[#allocation8 + $0x140] sm:$0xff]
    %v116 = vld [vmem:[#allocation8 + $0x148] sm:$0xff]
    %v117 = vld [vmem:[#allocation8 + $0x150] sm:$0xff]
    %v118 = vld [vmem:[#allocation8 + $0x158] sm:$0xff]
    %v119 = vld [vmem:[#allocation8 + $0x160] sm:$0xff]
    %v120 = vld [vmem:[#allocation8 + $0x168] sm:$0xff]
    %v121 = vld [vmem:[#allocation8 + $0x170] sm:$0xff]
    %v122 = vld [vmem:[#allocation8 + $0x178] sm:$0xff]
    %v123 = vld [vmem:[#allocation8 + $0x180] sm:$0xff]
    %v124 = vld [vmem:[#allocation8 + $0x188] sm:$0xff]
    %v125 = vld [vmem:[#allocation8 + $0x190] sm:$0xff]
    %v126 = vld [vmem:[#allocation8 + $0x198] sm:$0xff]
    %v127 = vld [vmem:[#allocation8 + $0x1a0] sm:$0xff]
    %v128 = vld [vmem:[#allocation8 + $0x1a8] sm:$0xff]
    %v129 = vld [vmem:[#allocation8 + $0x1b0] sm:$0xff]
    %v130 = vld [vmem:[#allocation8 + $0x1b8] sm:$0xff]
    %v131 = vld [vmem:[#allocation8 + $0x1c0] sm:$0xff]
    %v132 = vld [vmem:[#allocation8 + $0x1c8] sm:$0xff]
    %v133 = vld [vmem:[#allocation8 + $0x1d0] sm:$0xff]
    %v134 = vld [vmem:[#allocation8 + $0x1d8] sm:$0xff]
    %v135 = vld [vmem:[#allocation8 + $0x1e0] sm:$0xff]
    %v136 = vld [vmem:[#allocation8 + $0x1e8] sm:$0xff]
    %v137 = vld [vmem:[#allocation8 + $0x1f0] sm:$0xff]
    %v138 = vld [vmem:[#allocation8 + $0x1f8] sm:$0xff]
    %v139 = vld [vmem:[%s3] sm:$0xf]
    %v141 = vlaneseq
    %v142 = vshrl.u32 %v141, 7
    %v143 = vsub.s32 0, %v142
    %v144 = vrot.slane %v139, %v143
    %v145 = vlaneseq
    %v146 = vshrl.u32 %v145, 7
    %v147 = vsub.s32 1, %v146
    %v148 = vrot.slane %v139, %v147
    %v149 = vlaneseq
    %v150 = vshrl.u32 %v149, 7
    %v151 = vsub.s32 2, %v150
    %v152 = vrot.slane %v139, %v151
    %v153 = vlaneseq
    %v154 = vshrl.u32 %v153, 7
    %v155 = vsub.s32 3, %v154
    %v156 = vrot.slane %v139, %v155
    %vm161 = vcmask 130048
    %v163 = vsel %vm161, %v59, 0
    %v166 = vsel %vm161, %v60, 0
    %v169 = vsel %vm161, %v61, 0
    %v172 = vsel %vm161, %v62, 0
    %v175 = vsel %vm161, %v63, 0
    %v178 = vsel %vm161, %v64, 0
    %v181 = vsel %vm161, %v65, 0
    %v184 = vsel %vm161, %v66, 0
    %186 = vmatprep.subr.mxu0 %v68
    %187 = vmatpush1.msra.mxu0 %v67
    %188 = vmatprep.subr.mxu0 %v72
    %189 = vmatpush1.msra.mxu0 %v71
    %190 = vmatprep.subr.mxu0 0.0
    %191 = vmatpush1.msra.mxu0 0.0
    %192 = vmatprep.subr.mxu0 0.0
    %193 = vmatpush1.msra.mxu0 0.0
    %194 = vmatprep.subr.mxu0 0.0
    %195 = vmatpush1.msra.mxu0 0.0
    %196 = vmatprep.subr.mxu0 0.0
    %197 = vmatpush1.msra.mxu0 0.0
    %198 = vmatprep.subr.mxu0 0.0
    %199 = vmatpush1.msra.mxu0 0.0
    %200 = vmatprep.subr.mxu0 0.0
    %201 = vmatpush1.msra.mxu0 0.0
    %202 = vmatprep.subr.mxu0 0.0
    %203 = vmatpush1.msra.mxu0 0.0
    %204 = vmatprep.subr.mxu0 0.0
    %205 = vmatpush1.msra.mxu0 0.0
    %206 = vmatprep.subr.mxu0 0.0
    %207 = vmatpush1.msra.mxu0 0.0
    %208 = vmatprep.subr.mxu0 0.0
    %209 = vmatpush1.msra.mxu0 0.0
    %210 = vmatprep.subr.mxu0 0.0
    %211 = vmatpush1.msra.mxu0 0.0
    %212 = vmatprep.subr.mxu0 0.0
    %213 = vmatpush1.msra.mxu0 0.0
    %214 = vmatprep.subr.mxu0 0.0
    %215 = vmatpush1.msra.mxu0 0.0
    %216 = vmatprep.subr.mxu0 0.0
    %217 = vmatpush1.msra.mxu0 0.0
    %218 = vmatprep.subr.mxu0 0.0
    %219 = vmatpush1.msra.mxu0 0.0
    %220 = vmatprep.subr.mxu0 0.0
    %221 = vmatpush1.msra.mxu0 0.0
    %222 = vmatprep.subr.mxu0 0.0
    %223 = vmatpush1.msra.mxu0 0.0
    %224 = vmatprep.subr.mxu0 0.0
    %225 = vmatpush1.msra.mxu0 0.0
    %226 = vmatprep.subr.mxu0 0.0
    %227 = vmatpush1.msra.mxu0 0.0
    %228 = vmatprep.subr.mxu0 0.0
    %229 = vmatpush1.msra.mxu0 0.0
    %230 = vmatprep.subr.mxu0 0.0
    %231 = vmatpush1.msra.mxu0 0.0
    %232 = vmatprep.subr.mxu0 0.0
    %233 = vmatpush1.msra.mxu0 0.0
    %234 = vmatprep.subr.mxu0 0.0
    %235 = vmatpush1.msra.mxu0 0.0
    %236 = vmatprep.subr.mxu0 0.0
    %237 = vmatpush1.msra.mxu0 0.0
    %238 = vmatprep.subr.mxu0 0.0
    %239 = vmatpush1.msra.mxu0 0.0
    %240 = vmatprep.subr.mxu0 0.0
    %241 = vmatpush1.msra.mxu0 0.0
    %242 = vmatprep.subr.mxu0 0.0
    %243 = vmatpush1.msra.mxu0 0.0
    %244 = vmatprep.subr.mxu0 0.0
    %245 = vmatpush1.msra.mxu0 0.0
    %246 = vmatprep.subr.mxu0 0.0
    %247 = vmatpush1.msra.mxu0 0.0
    %248 = vmatprep.subr.mxu0 0.0
    %249 = vmatpush1.msra.mxu0 0.0
    %250 = vmatprep.mubr.f32.mxu0 0.0
    %251 = vmatmul.mubr.f32.gmra.mrb[0].mxu0 %v163
    %v252 = vpop.f32.mrb[0].mxu0
    %v253 = vadd.f32 %v144, %v252
    %v254 = vpop.f32.mrb[0].mxu0
    %v255 = vadd.f32 %v148, %v254
    %256 = vmatprep.mubr.f32.mxu0 0.0
    %257 = vmatmul.mubr.f32.gmra.mrb[0].mxu0 %v166
    %v258 = vpop.f32.mrb[0].mxu0
    %v259 = vadd.f32 %v144, %v258
    %v260 = vpop.f32.mrb[0].mxu0
    %v261 = vadd.f32 %v148, %v260
    %262 = vmatprep.mubr.f32.mxu0 0.0
    %263 = vmatmul.mubr.f32.gmra.mrb[0].mxu0 %v169
    %v264 = vpop.f32.mrb[0].mxu0
    %v265 = vadd.f32 %v144, %v264
    %v266 = vpop.f32.mrb[0].mxu0
    %v267 = vadd.f32 %v148, %v266
    %268 = vmatprep.mubr.f32.mxu0 0.0
    %269 = vmatmul.mubr.f32.gmra.mrb[0].mxu0 %v172
    %v270 = vpop.f32.mrb[0].mxu0
    %v271 = vadd.f32 %v144, %v270
    %v272 = vpop.f32.mrb[0].mxu0
    %v273 = vadd.f32 %v148, %v272
    %274 = vmatprep.mubr.f32.mxu0 0.0
    %275 = vmatmul.mubr.f32.gmra.mrb[0].mxu0 %v175
    %v276 = vpop.f32.mrb[0].mxu0
    %v277 = vadd.f32 %v144, %v276
    %v278 = vpop.f32.mrb[0].mxu0
    %v279 = vadd.f32 %v148, %v278
    %280 = vmatprep.mubr.f32.mxu0 0.0
    %281 = vmatmul.mubr.f32.gmra.mrb[0].mxu0 %v178
    %v282 = vpop.f32.mrb[0].mxu0
    %v283 = vadd.f32 %v144, %v282
    %v284 = vpop.f32.mrb[0].mxu0
    %v285 = vadd.f32 %v148, %v284
    %286 = vmatprep.mubr.f32.mxu0 0.0
    %287 = vmatmul.mubr.f32.gmra.mrb[0].mxu0 %v181
    %v288 = vpop.f32.mrb[0].mxu0
    %v289 = vadd.f32 %v144, %v288
    %v290 = vpop.f32.mrb[0].mxu0
    %v291 = vadd.f32 %v148, %v290
    %292 = vmatprep.mubr.f32.mxu0 0.0
    %293 = vmatmul.mubr.f32.gmra.mrb[0].mxu0 %v184
    %v294 = vpop.f32.mrb[0].mxu0
    %v295 = vadd.f32 %v144, %v294
    %v296 = vpop.f32.mrb[0].mxu0
    %v297 = vadd.f32 %v148, %v296
    %298 = vdwg.mxu0
    %299 = vmatprep.subr.mxu0 %v70
    %300 = vmatpush1.msra.mxu0 %v69
    %301 = vmatprep.subr.mxu0 %v74
    %302 = vmatpush1.msra.mxu0 %v73
    %303 = vmatprep.subr.mxu0 0.0
    %304 = vmatpush1.msra.mxu0 0.0
    %305 = vmatprep.subr.mxu0 0.0
    %306 = vmatpush1.msra.mxu0 0.0
    %307 = vmatprep.subr.mxu0 0.0
    %308 = vmatpush1.msra.mxu0 0.0
    %309 = vmatprep.subr.mxu0 0.0
    %310 = vmatpush1.msra.mxu0 0.0
    %311 = vmatprep.subr.mxu0 0.0
    %312 = vmatpush1.msra.mxu0 0.0
    %313 = vmatprep.subr.mxu0 0.0
    %314 = vmatpush1.msra.mxu0 0.0
    %315 = vmatprep.subr.mxu0 0.0
    %316 = vmatpush1.msra.mxu0 0.0
    %317 = vmatprep.subr.mxu0 0.0
    %318 = vmatpush1.msra.mxu0 0.0
    %319 = vmatprep.subr.mxu0 0.0
    %320 = vmatpush1.msra.mxu0 0.0
    %321 = vmatprep.subr.mxu0 0.0
    %322 = vmatpush1.msra.mxu0 0.0
    %323 = vmatprep.subr.mxu0 0.0
    %324 = vmatpush1.msra.mxu0 0.0
    %325 = vmatprep.subr.mxu0 0.0
    %326 = vmatpush1.msra.mxu0 0.0
    %327 = vmatprep.subr.mxu0 0.0
    %328 = vmatpush1.msra.mxu0 0.0
    %329 = vmatprep.subr.mxu0 0.0
    %330 = vmatpush1.msra.mxu0 0.0
    %331 = vmatprep.subr.mxu0 0.0
    %332 = vmatpush1.msra.mxu0 0.0
    %333 = vmatprep.subr.mxu0 0.0
    %334 = vmatpush1.msra.mxu0 0.0
    %335 = vmatprep.subr.mxu0 0.0
    %336 = vmatpush1.msra.mxu0 0.0
    %337 = vmatprep.subr.mxu0 0.0
    %338 = vmatpush1.msra.mxu0 0.0
    %339 = vmatprep.subr.mxu0 0.0
    %340 = vmatpush1.msra.mxu0 0.0
    %341 = vmatprep.subr.mxu0 0.0
    %342 = vmatpush1.msra.mxu0 0.0
    %343 = vmatprep.subr.mxu0 0.0
    %344 = vmatpush1.msra.mxu0 0.0
    %345 = vmatprep.subr.mxu0 0.0
    %346 = vmatpush1.msra.mxu0 0.0
    %347 = vmatprep.subr.mxu0 0.0
    %348 = vmatpush1.msra.mxu0 0.0
    %349 = vmatprep.subr.mxu0 0.0
    %350 = vmatpush1.msra.mxu0 0.0
    %351 = vmatprep.subr.mxu0 0.0
    %352 = vmatpush1.msra.mxu0 0.0
    %353 = vmatprep.subr.mxu0 0.0
    %354 = vmatpush1.msra.mxu0 0.0
    %355 = vmatprep.subr.mxu0 0.0
    %356 = vmatpush1.msra.mxu0 0.0
    %357 = vmatprep.subr.mxu0 0.0
    %358 = vmatpush1.msra.mxu0 0.0
    %359 = vmatprep.subr.mxu0 0.0
    %360 = vmatpush1.msra.mxu0 0.0
    %361 = vmatprep.subr.mxu0 0.0
    %362 = vmatpush1.msra.mxu0 0.0
    %363 = vmatprep.mubr.f32.mxu0 0.0
    %364 = vmatmul.mubr.f32.gmra.mrb[0].mxu0 %v163
    %v365 = vpop.f32.mrb[0].mxu0
    %v366 = vadd.f32 %v152, %v365
    %v367 = vpop.f32.mrb[0].mxu0
    %v368 = vadd.f32 %v156, %v367
    %369 = vmatprep.mubr.f32.mxu0 0.0
    %370 = vmatmul.mubr.f32.gmra.mrb[0].mxu0 %v166
    %v371 = vpop.f32.mrb[0].mxu0
    %v372 = vadd.f32 %v152, %v371
    %v373 = vpop.f32.mrb[0].mxu0
    %v374 = vadd.f32 %v156, %v373
    %375 = vmatprep.mubr.f32.mxu0 0.0
    %376 = vmatmul.mubr.f32.gmra.mrb[0].mxu0 %v169
    %v377 = vpop.f32.mrb[0].mxu0
    %v378 = vadd.f32 %v152, %v377
    %v379 = vpop.f32.mrb[0].mxu0
    %v380 = vadd.f32 %v156, %v379
    %381 = vmatprep.mubr.f32.mxu0 0.0
    %382 = vmatmul.mubr.f32.gmra.mrb[0].mxu0 %v172
    %v383 = vpop.f32.mrb[0].mxu0
    %v384 = vadd.f32 %v152, %v383
    %v385 = vpop.f32.mrb[0].mxu0
    %v386 = vadd.f32 %v156, %v385
    %387 = vmatprep.mubr.f32.mxu0 0.0
    %388 = vmatmul.mubr.f32.gmra.mrb[0].mxu0 %v175
    %v389 = vpop.f32.mrb[0].mxu0
    %v390 = vadd.f32 %v152, %v389
    %v391 = vpop.f32.mrb[0].mxu0
    %v392 = vadd.f32 %v156, %v391
    %393 = vmatprep.mubr.f32.mxu0 0.0
    %394 = vmatmul.mubr.f32.gmra.mrb[0].mxu0 %v178
    %v395 = vpop.f32.mrb[0].mxu0
    %v396 = vadd.f32 %v152, %v395
    %v397 = vpop.f32.mrb[0].mxu0
    %v398 = vadd.f32 %v156, %v397
    %399 = vmatprep.mubr.f32.mxu0 0.0
    %400 = vmatmul.mubr.f32.gmra.mrb[0].mxu0 %v181
    %v401 = vpop.f32.mrb[0].mxu0
    %v402 = vadd.f32 %v152, %v401
    %v403 = vpop.f32.mrb[0].mxu0
    %v404 = vadd.f32 %v156, %v403
    %405 = vmatprep.mubr.f32.mxu0 0.0
    %406 = vmatmul.mubr.f32.gmra.mrb[0].mxu0 %v184
    %v407 = vpop.f32.mrb[0].mxu0
    %v408 = vadd.f32 %v152, %v407
    %v409 = vpop.f32.mrb[0].mxu0
    %v410 = vadd.f32 %v156, %v409
    %411 = vdwg.mxu0
    %v444 = vrot.slane %v259, 7
    %vm445 = vcmask 1041409
    %v446 = vsel %vm445, %v444, %v253
    %v447 = vrot.slane %v265, 6
    %vm448 = vcmask 1042434
    %v449 = vsel %vm448, %v447, %v446
    %v450 = vrot.slane %v271, 5
    %vm451 = vcmask 1043459
    %v452 = vsel %vm451, %v450, %v449
    %v453 = vrot.slane %v277, 4
    %vm454 = vcmask 1044484
    %v455 = vsel %vm454, %v453, %v452
    %v456 = vrot.slane %v283, 3
    %vm457 = vcmask 1045509
    %v458 = vsel %vm457, %v456, %v455
    %v459 = vrot.slane %v289, 2
    %vm460 = vcmask 1046534
    %v461 = vsel %vm460, %v459, %v458
    %v462 = vrot.slane %v295, 1
    %vm463 = vcmask 1047559
    %v464 = vsel %vm463, %v462, %v461
    %v465 = vrot.slane %v261, 7
    %v466 = vsel %vm445, %v465, %v255
    %v467 = vrot.slane %v267, 6
    %v468 = vsel %vm448, %v467, %v466
    %v469 = vrot.slane %v273, 5
    %v470 = vsel %vm451, %v469, %v468
    %v471 = vrot.slane %v279, 4
    %v472 = vsel %vm454, %v471, %v470
    %v473 = vrot.slane %v285, 3
    %v474 = vsel %vm457, %v473, %v472
    %v475 = vrot.slane %v291, 2
    %v476 = vsel %vm460, %v475, %v474
    %v477 = vrot.slane %v297, 1
    %v478 = vsel %vm463, %v477, %v476
    %v479 = vrot.slane %v372, 7
    %v480 = vsel %vm445, %v479, %v366
    %v481 = vrot.slane %v378, 6
    %v482 = vsel %vm448, %v481, %v480
    %v483 = vrot.slane %v384, 5
    %v484 = vsel %vm451, %v483, %v482
    %v485 = vrot.slane %v390, 4
    %v486 = vsel %vm454, %v485, %v484
    %v487 = vrot.slane %v396, 3
    %v488 = vsel %vm457, %v487, %v486
    %v489 = vrot.slane %v402, 2
    %v490 = vsel %vm460, %v489, %v488
    %v491 = vrot.slane %v408, 1
    %v492 = vsel %vm463, %v491, %v490
    %v493 = vrot.slane %v374, 7
    %v494 = vsel %vm445, %v493, %v368
    %v495 = vrot.slane %v380, 6
    %v496 = vsel %vm448, %v495, %v494
    %v497 = vrot.slane %v386, 5
    %v498 = vsel %vm451, %v497, %v496
    %v499 = vrot.slane %v392, 4
    %v500 = vsel %vm454, %v499, %v498
    %v501 = vrot.slane %v398, 3
    %v502 = vsel %vm457, %v501, %v500
    %v503 = vrot.slane %v404, 2
    %v504 = vsel %vm460, %v503, %v502
    %v505 = vrot.slane %v410, 1
    %v506 = vsel %vm463, %v505, %v504
    %511 = vst [vmem:[#allocation2] sm:$0xff] %v464
    %512 = vst [vmem:[#allocation2 + $0x8] sm:$0xff] %v478
    %513 = vst [vmem:[#allocation2 + $0x10] sm:$0xff] %v492
    %514 = vst [vmem:[#allocation2 + $0x18] sm:$0xff] %v506
    %v515 = vrot.slane %v253, 1
    %v516 = vsel %vm445, %v259, %v515
    %v517 = vrot.slane %v265, 7
    %v518 = vsel %vm448, %v517, %v516
    %v519 = vrot.slane %v271, 6
    %v520 = vsel %vm451, %v519, %v518
    %v521 = vrot.slane %v277, 5
    %v522 = vsel %vm454, %v521, %v520
    %v523 = vrot.slane %v283, 4
    %v524 = vsel %vm457, %v523, %v522
    %v525 = vrot.slane %v289, 3
    %v526 = vsel %vm460, %v525, %v524
    %v527 = vrot.slane %v295, 2
    %v528 = vsel %vm463, %v527, %v526
    %v529 = vrot.slane %v255, 1
    %v530 = vsel %vm445, %v261, %v529
    %v531 = vrot.slane %v267, 7
    %v532 = vsel %vm448, %v531, %v530
    %v533 = vrot.slane %v273, 6
    %v534 = vsel %vm451, %v533, %v532
    %v535 = vrot.slane %v279, 5
    %v536 = vsel %vm454, %v535, %v534
    %v537 = vrot.slane %v285, 4
    %v538 = vsel %vm457, %v537, %v536
    %v539 = vrot.slane %v291, 3
    %v540 = vsel %vm460, %v539, %v538
    %v541 = vrot.slane %v297, 2
    %v542 = vsel %vm463, %v541, %v540
    %v543 = vrot.slane %v366, 1
    %v544 = vsel %vm445, %v372, %v543
    %v545 = vrot.slane %v378, 7
    %v546 = vsel %vm448, %v545, %v544
    %v547 = vrot.slane %v384, 6
    %v548 = vsel %vm451, %v547, %v546
    %v549 = vrot.slane %v390, 5
    %v550 = vsel %vm454, %v549, %v548
    %v551 = vrot.slane %v396, 4
    %v552 = vsel %vm457, %v551, %v550
    %v553 = vrot.slane %v402, 3
    %v554 = vsel %vm460, %v553, %v552
    %v555 = vrot.slane %v408, 2
    %v556 = vsel %vm463, %v555, %v554
    %v557 = vrot.slane %v368, 1
    %v558 = vsel %vm445, %v374, %v557
    %v559 = vrot.slane %v380, 7
    %v560 = vsel %vm448, %v559, %v558
    %v561 = vrot.slane %v386, 6
    %v562 = vsel %vm451, %v561, %v560
    %v563 = vrot.slane %v392, 5
    %v564 = vsel %vm454, %v563, %v562
    %v565 = vrot.slane %v398, 4
    %v566 = vsel %vm457, %v565, %v564
    %v567 = vrot.slane %v404, 3
    %v568 = vsel %vm460, %v567, %v566
    %v569 = vrot.slane %v410, 2
    %v570 = vsel %vm463, %v569, %v568
    %s575 = scalar_lea.vmem [#allocation2], 32
    %576 = vst [vmem:[%s575] sm:$0xff] %v528
    %577 = vst [vmem:[%s575 + $0x8] sm:$0xff] %v542
    %578 = vst [vmem:[%s575 + $0x10] sm:$0xff] %v556
    %579 = vst [vmem:[%s575 + $0x18] sm:$0xff] %v570
    %v580 = vrot.slane %v253, 2
    %v581 = vrot.slane %v259, 1
    %v582 = vsel %vm445, %v581, %v580
    %v583 = vsel %vm448, %v265, %v582
    %v584 = vrot.slane %v271, 7
    %v585 = vsel %vm451, %v584, %v583
    %v586 = vrot.slane %v277, 6
    %v587 = vsel %vm454, %v586, %v585
    %v588 = vrot.slane %v283, 5
    %v589 = vsel %vm457, %v588, %v587
    %v590 = vrot.slane %v289, 4
    %v591 = vsel %vm460, %v590, %v589
    %v592 = vrot.slane %v295, 3
    %v593 = vsel %vm463, %v592, %v591
    %v594 = vrot.slane %v255, 2
    %v595 = vrot.slane %v261, 1
    %v596 = vsel %vm445, %v595, %v594
    %v597 = vsel %vm448, %v267, %v596
    %v598 = vrot.slane %v273, 7
    %v599 = vsel %vm451, %v598, %v597
    %v600 = vrot.slane %v279, 6
    %v601 = vsel %vm454, %v600, %v599
    %v602 = vrot.slane %v285, 5
    %v603 = vsel %vm457, %v602, %v601
    %v604 = vrot.slane %v291, 4
    %v605 = vsel %vm460, %v604, %v603
    %v606 = vrot.slane %v297, 3
    %v607 = vsel %vm463, %v606, %v605
    %v608 = vrot.slane %v366, 2
    %v609 = vrot.slane %v372, 1
    %v610 = vsel %vm445, %v609, %v608
    %v611 = vsel %vm448, %v378, %v610
    %v612 = vrot.slane %v384, 7
    %v613 = vsel %vm451, %v612, %v611
    %v614 = vrot.slane %v390, 6
    %v615 = vsel %vm454, %v614, %v613
    %v616 = vrot.slane %v396, 5
    %v617 = vsel %vm457, %v616, %v615
    %v618 = vrot.slane %v402, 4
    %v619 = vsel %vm460, %v618, %v617
    %v620 = vrot.slane %v408, 3
    %v621 = vsel %vm463, %v620, %v619
    %v622 = vrot.slane %v368, 2
    %v623 = vrot.slane %v374, 1
    %v624 = vsel %vm445, %v623, %v622
    %v625 = vsel %vm448, %v380, %v624
    %v626 = vrot.slane %v386, 7
    %v627 = vsel %vm451, %v626, %v625
    %v628 = vrot.slane %v392, 6
    %v629 = vsel %vm454, %v628, %v627
    %v630 = vrot.slane %v398, 5
    %v631 = vsel %vm457, %v630, %v629
    %v632 = vrot.slane %v404, 4
    %v633 = vsel %vm460, %v632, %v631
    %v634 = vrot.slane %v410, 3
    %v635 = vsel %vm463, %v634, %v633
    %s640 = scalar_lea.vmem [#allocation2], 64
    %641 = vst [vmem:[%s640] sm:$0xff] %v593
    %642 = vst [vmem:[%s640 + $0x8] sm:$0xff] %v607
    %643 = vst [vmem:[%s640 + $0x10] sm:$0xff] %v621
    %644 = vst [vmem:[%s640 + $0x18] sm:$0xff] %v635
    %v645 = vrot.slane %v253, 3
    %v646 = vrot.slane %v259, 2
    %v647 = vsel %vm445, %v646, %v645
    %v648 = vrot.slane %v265, 1
    %v649 = vsel %vm448, %v648, %v647
    %v650 = vsel %vm451, %v271, %v649
    %v651 = vrot.slane %v277, 7
    %v652 = vsel %vm454, %v651, %v650
    %v653 = vrot.slane %v283, 6
    %v654 = vsel %vm457, %v653, %v652
    %v655 = vrot.slane %v289, 5
    %v656 = vsel %vm460, %v655, %v654
    %v657 = vrot.slane %v295, 4
    %v658 = vsel %vm463, %v657, %v656
    %v659 = vrot.slane %v255, 3
    %v660 = vrot.slane %v261, 2
    %v661 = vsel %vm445, %v660, %v659
    %v662 = vrot.slane %v267, 1
    %v663 = vsel %vm448, %v662, %v661
    %v664 = vsel %vm451, %v273, %v663
    %v665 = vrot.slane %v279, 7
    %v666 = vsel %vm454, %v665, %v664
    %v667 = vrot.slane %v285, 6
    %v668 = vsel %vm457, %v667, %v666
    %v669 = vrot.slane %v291, 5
    %v670 = vsel %vm460, %v669, %v668
    %v671 = vrot.slane %v297, 4
    %v672 = vsel %vm463, %v671, %v670
    %v673 = vrot.slane %v366, 3
    %v674 = vrot.slane %v372, 2
    %v675 = vsel %vm445, %v674, %v673
    %v676 = vrot.slane %v378, 1
    %v677 = vsel %vm448, %v676, %v675
    %v678 = vsel %vm451, %v384, %v677
    %v679 = vrot.slane %v390, 7
    %v680 = vsel %vm454, %v679, %v678
    %v681 = vrot.slane %v396, 6
    %v682 = vsel %vm457, %v681, %v680
    %v683 = vrot.slane %v402, 5
    %v684 = vsel %vm460, %v683, %v682
    %v685 = vrot.slane %v408, 4
    %v686 = vsel %vm463, %v685, %v684
    %v687 = vrot.slane %v368, 3
    %v688 = vrot.slane %v374, 2
    %v689 = vsel %vm445, %v688, %v687
    %v690 = vrot.slane %v380, 1
    %v691 = vsel %vm448, %v690, %v689
    %v692 = vsel %vm451, %v386, %v691
    %v693 = vrot.slane %v392, 7
    %v694 = vsel %vm454, %v693, %v692
    %v695 = vrot.slane %v398, 6
    %v696 = vsel %vm457, %v695, %v694
    %v697 = vrot.slane %v404, 5
    %v698 = vsel %vm460, %v697, %v696
    %v699 = vrot.slane %v410, 4
    %v700 = vsel %vm463, %v699, %v698
    %s705 = scalar_lea.vmem [#allocation2], 96
    %706 = vst [vmem:[%s705] sm:$0xff] %v658
    %707 = vst [vmem:[%s705 + $0x8] sm:$0xff] %v672
    %708 = vst [vmem:[%s705 + $0x10] sm:$0xff] %v686
    %709 = vst [vmem:[%s705 + $0x18] sm:$0xff] %v700
    %v710 = vrot.slane %v253, 4
    %v711 = vrot.slane %v259, 3
    %v712 = vsel %vm445, %v711, %v710
    %v713 = vrot.slane %v265, 2
    %v714 = vsel %vm448, %v713, %v712
    %v715 = vrot.slane %v271, 1
    %v716 = vsel %vm451, %v715, %v714
    %v717 = vsel %vm454, %v277, %v716
    %v718 = vrot.slane %v283, 7
    %v719 = vsel %vm457, %v718, %v717
    %v720 = vrot.slane %v289, 6
    %v721 = vsel %vm460, %v720, %v719
    %v722 = vrot.slane %v295, 5
    %v723 = vsel %vm463, %v722, %v721
    %v724 = vrot.slane %v255, 4
    %v725 = vrot.slane %v261, 3
    %v726 = vsel %vm445, %v725, %v724
    %v727 = vrot.slane %v267, 2
    %v728 = vsel %vm448, %v727, %v726
    %v729 = vrot.slane %v273, 1
    %v730 = vsel %vm451, %v729, %v728
    %v731 = vsel %vm454, %v279, %v730
    %v732 = vrot.slane %v285, 7
    %v733 = vsel %vm457, %v732, %v731
    %v734 = vrot.slane %v291, 6
    %v735 = vsel %vm460, %v734, %v733
    %v736 = vrot.slane %v297, 5
    %v737 = vsel %vm463, %v736, %v735
    %v738 = vrot.slane %v366, 4
    %v739 = vrot.slane %v372, 3
    %v740 = vsel %vm445, %v739, %v738
    %v741 = vrot.slane %v378, 2
    %v742 = vsel %vm448, %v741, %v740
    %v743 = vrot.slane %v384, 1
    %v744 = vsel %vm451, %v743, %v742
    %v745 = vsel %vm454, %v390, %v744
    %v746 = vrot.slane %v396, 7
    %v747 = vsel %vm457, %v746, %v745
    %v748 = vrot.slane %v402, 6
    %v749 = vsel %vm460, %v748, %v747
    %v750 = vrot.slane %v408, 5
    %v751 = vsel %vm463, %v750, %v749
    %v752 = vrot.slane %v368, 4
    %v753 = vrot.slane %v374, 3
    %v754 = vsel %vm445, %v753, %v752
    %v755 = vrot.slane %v380, 2
    %v756 = vsel %vm448, %v755, %v754
    %v757 = vrot.slane %v386, 1
    %v758 = vsel %vm451, %v757, %v756
    %v759 = vsel %vm454, %v392, %v758
    %v760 = vrot.slane %v398, 7
    %v761 = vsel %vm457, %v760, %v759
    %v762 = vrot.slane %v404, 6
    %v763 = vsel %vm460, %v762, %v761
    %v764 = vrot.slane %v410, 5
    %v765 = vsel %vm463, %v764, %v763
    %s770 = scalar_lea.vmem [#allocation2], 128
    %771 = vst [vmem:[%s770] sm:$0xff] %v723
    %772 = vst [vmem:[%s770 + $0x8] sm:$0xff] %v737
    %773 = vst [vmem:[%s770 + $0x10] sm:$0xff] %v751
    %774 = vst [vmem:[%s770 + $0x18] sm:$0xff] %v765
    %v775 = vrot.slane %v253, 5
    %v776 = vrot.slane %v259, 4
    %v777 = vsel %vm445, %v776, %v775
    %v778 = vrot.slane %v265, 3
    %v779 = vsel %vm448, %v778, %v777
    %v780 = vrot.slane %v271, 2
    %v781 = vsel %vm451, %v780, %v779
    %v782 = vrot.slane %v277, 1
    %v783 = vsel %vm454, %v782, %v781
    %v784 = vsel %vm457, %v283, %v783
    %v785 = vrot.slane %v289, 7
    %v786 = vsel %vm460, %v785, %v784
    %v787 = vrot.slane %v295, 6
    %v788 = vsel %vm463, %v787, %v786
    %v789 = vrot.slane %v255, 5
    %v790 = vrot.slane %v261, 4
    %v791 = vsel %vm445, %v790, %v789
    %v792 = vrot.slane %v267, 3
    %v793 = vsel %vm448, %v792, %v791
    %v794 = vrot.slane %v273, 2
    %v795 = vsel %vm451, %v794, %v793
    %v796 = vrot.slane %v279, 1
    %v797 = vsel %vm454, %v796, %v795
    %v798 = vsel %vm457, %v285, %v797
    %v799 = vrot.slane %v291, 7
    %v800 = vsel %vm460, %v799, %v798
    %v801 = vrot.slane %v297, 6
    %v802 = vsel %vm463, %v801, %v800
    %v803 = vrot.slane %v366, 5
    %v804 = vrot.slane %v372, 4
    %v805 = vsel %vm445, %v804, %v803
    %v806 = vrot.slane %v378, 3
    %v807 = vsel %vm448, %v806, %v805
    %v808 = vrot.slane %v384, 2
    %v809 = vsel %vm451, %v808, %v807
    %v810 = vrot.slane %v390, 1
    %v811 = vsel %vm454, %v810, %v809
    %v812 = vsel %vm457, %v396, %v811
    %v813 = vrot.slane %v402, 7
    %v814 = vsel %vm460, %v813, %v812
    %v815 = vrot.slane %v408, 6
    %v816 = vsel %vm463, %v815, %v814
    %v817 = vrot.slane %v368, 5
    %v818 = vrot.slane %v374, 4
    %v819 = vsel %vm445, %v818, %v817
    %v820 = vrot.slane %v380, 3
    %v821 = vsel %vm448, %v820, %v819
    %v822 = vrot.slane %v386, 2
    %v823 = vsel %vm451, %v822, %v821
    %v824 = vrot.slane %v392, 1
    %v825 = vsel %vm454, %v824, %v823
    %v826 = vsel %vm457, %v398, %v825
    %v827 = vrot.slane %v404, 7
    %v828 = vsel %vm460, %v827, %v826
    %v829 = vrot.slane %v410, 6
    %v830 = vsel %vm463, %v829, %v828
    %s835 = scalar_lea.vmem [#allocation2], 160
    %836 = vst [vmem:[%s835] sm:$0xff] %v788
    %837 = vst [vmem:[%s835 + $0x8] sm:$0xff] %v802
    %838 = vst [vmem:[%s835 + $0x10] sm:$0xff] %v816
    %839 = vst [vmem:[%s835 + $0x18] sm:$0xff] %v830
    %v840 = vrot.slane %v253, 6
    %v841 = vrot.slane %v259, 5
    %v842 = vsel %vm445, %v841, %v840
    %v843 = vrot.slane %v265, 4
    %v844 = vsel %vm448, %v843, %v842
    %v845 = vrot.slane %v271, 3
    %v846 = vsel %vm451, %v845, %v844
    %v847 = vrot.slane %v277, 2
    %v848 = vsel %vm454, %v847, %v846
    %v849 = vrot.slane %v283, 1
    %v850 = vsel %vm457, %v849, %v848
    %v851 = vsel %vm460, %v289, %v850
    %v852 = vrot.slane %v295, 7
    %v853 = vsel %vm463, %v852, %v851
    %v854 = vrot.slane %v255, 6
    %v855 = vrot.slane %v261, 5
    %v856 = vsel %vm445, %v855, %v854
    %v857 = vrot.slane %v267, 4
    %v858 = vsel %vm448, %v857, %v856
    %v859 = vrot.slane %v273, 3
    %v860 = vsel %vm451, %v859, %v858
    %v861 = vrot.slane %v279, 2
    %v862 = vsel %vm454, %v861, %v860
    %v863 = vrot.slane %v285, 1
    %v864 = vsel %vm457, %v863, %v862
    %v865 = vsel %vm460, %v291, %v864
    %v866 = vrot.slane %v297, 7
    %v867 = vsel %vm463, %v866, %v865
    %v868 = vrot.slane %v366, 6
    %v869 = vrot.slane %v372, 5
    %v870 = vsel %vm445, %v869, %v868
    %v871 = vrot.slane %v378, 4
    %v872 = vsel %vm448, %v871, %v870
    %v873 = vrot.slane %v384, 3
    %v874 = vsel %vm451, %v873, %v872
    %v875 = vrot.slane %v390, 2
    %v876 = vsel %vm454, %v875, %v874
    %v877 = vrot.slane %v396, 1
    %v878 = vsel %vm457, %v877, %v876
    %v879 = vsel %vm460, %v402, %v878
    %v880 = vrot.slane %v408, 7
    %v881 = vsel %vm463, %v880, %v879
    %v882 = vrot.slane %v368, 6
    %v883 = vrot.slane %v374, 5
    %v884 = vsel %vm445, %v883, %v882
    %v885 = vrot.slane %v380, 4
    %v886 = vsel %vm448, %v885, %v884
    %v887 = vrot.slane %v386, 3
    %v888 = vsel %vm451, %v887, %v886
    %v889 = vrot.slane %v392, 2
    %v890 = vsel %vm454, %v889, %v888
    %v891 = vrot.slane %v398, 1
    %v892 = vsel %vm457, %v891, %v890
    %v893 = vsel %vm460, %v404, %v892
    %v894 = vrot.slane %v410, 7
    %v895 = vsel %vm463, %v894, %v893
    %s900 = scalar_lea.vmem [#allocation2], 192
    %901 = vst [vmem:[%s900] sm:$0xff] %v853
    %902 = vst [vmem:[%s900 + $0x8] sm:$0xff] %v867
    %903 = vst [vmem:[%s900 + $0x10] sm:$0xff] %v881
    %904 = vst [vmem:[%s900 + $0x18] sm:$0xff] %v895
    %v905 = vrot.slane %v253, 7
    %v906 = vrot.slane %v259, 6
    %v907 = vsel %vm445, %v906, %v905
    %v908 = vrot.slane %v265, 5
    %v909 = vsel %vm448, %v908, %v907
    %v910 = vrot.slane %v271, 4
    %v911 = vsel %vm451, %v910, %v909
    %v912 = vrot.slane %v277, 3
    %v913 = vsel %vm454, %v912, %v911
    %v914 = vrot.slane %v283, 2
    %v915 = vsel %vm457, %v914, %v913
    %v916 = vrot.slane %v289, 1
    %v917 = vsel %vm460, %v916, %v915
    %v918 = vsel %vm463, %v295, %v917
    %v919 = vrot.slane %v255, 7
    %v920 = vrot.slane %v261, 6
    %v921 = vsel %vm445, %v920, %v919
    %v922 = vrot.slane %v267, 5
    %v923 = vsel %vm448, %v922, %v921
    %v924 = vrot.slane %v273, 4
    %v925 = vsel %vm451, %v924, %v923
    %v926 = vrot.slane %v279, 3
    %v927 = vsel %vm454, %v926, %v925
    %v928 = vrot.slane %v285, 2
    %v929 = vsel %vm457, %v928, %v927
    %v930 = vrot.slane %v291, 1
    %v931 = vsel %vm460, %v930, %v929
    %v932 = vsel %vm463, %v297, %v931
    %v933 = vrot.slane %v366, 7
    %v934 = vrot.slane %v372, 6
    %v935 = vsel %vm445, %v934, %v933
    %v936 = vrot.slane %v378, 5
    %v937 = vsel %vm448, %v936, %v935
    %v938 = vrot.slane %v384, 4
    %v939 = vsel %vm451, %v938, %v937
    %v940 = vrot.slane %v390, 3
    %v941 = vsel %vm454, %v940, %v939
    %v942 = vrot.slane %v396, 2
    %v943 = vsel %vm457, %v942, %v941
    %v944 = vrot.slane %v402, 1
    %v945 = vsel %vm460, %v944, %v943
    %v946 = vsel %vm463, %v408, %v945
    %v947 = vrot.slane %v368, 7
    %v948 = vrot.slane %v374, 6
    %v949 = vsel %vm445, %v948, %v947
    %v950 = vrot.slane %v380, 5
    %v951 = vsel %vm448, %v950, %v949
    %v952 = vrot.slane %v386, 4
    %v953 = vsel %vm451, %v952, %v951
    %v954 = vrot.slane %v392, 3
    %v955 = vsel %vm454, %v954, %v953
    %v956 = vrot.slane %v398, 2
    %v957 = vsel %vm457, %v956, %v955
    %v958 = vrot.slane %v404, 1
    %v959 = vsel %vm460, %v958, %v957
    %v960 = vsel %vm463, %v410, %v959
    %s965 = scalar_lea.vmem [#allocation2], 224
    %966 = vst [vmem:[%s965] sm:$0xff] %v918
    %967 = vst [vmem:[%s965 + $0x8] sm:$0xff] %v932
    %968 = vst [vmem:[%s965 + $0x10] sm:$0xff] %v946
    %969 = vst [vmem:[%s965 + $0x18] sm:$0xff] %v960
    %v970 = vld [vmem:[#allocation2] sm:$0xff]
    %v971 = vld [vmem:[#allocation2 + $0x8] sm:$0xff]
    %v972 = vld [vmem:[#allocation2 + $0x10] sm:$0xff]
    %v973 = vld [vmem:[#allocation2 + $0x18] sm:$0xff]
    %974 = vmatprep.subr.mxu0 %v76
    %975 = vmatpush1.msra.mxu0 %v75
    %976 = vmatprep.subr.mxu0 %v80
    %977 = vmatpush1.msra.mxu0 %v79
    %978 = vmatprep.subr.mxu0 %v84
    %979 = vmatpush1.msra.mxu0 %v83
    %980 = vmatprep.subr.mxu0 %v88
    %981 = vmatpush1.msra.mxu0 %v87
    %982 = vmatprep.subr.mxu0 %v92
    %983 = vmatpush1.msra.mxu0 %v91
    %984 = vmatprep.subr.mxu0 %v96
    %985 = vmatpush1.msra.mxu0 %v95
    %986 = vmatprep.subr.mxu0 %v100
    %987 = vmatpush1.msra.mxu0 %v99
    %988 = vmatprep.subr.mxu0 %v104
    %989 = vmatpush1.msra.mxu0 %v103
    %990 = vmatprep.subr.mxu0 %v108
    %991 = vmatpush1.msra.mxu0 %v107
    %992 = vmatprep.subr.mxu0 %v112
    %993 = vmatpush1.msra.mxu0 %v111
    %994 = vmatprep.subr.mxu0 %v116
    %995 = vmatpush1.msra.mxu0 %v115
    %996 = vmatprep.subr.mxu0 %v120
    %997 = vmatpush1.msra.mxu0 %v119
    %998 = vmatprep.subr.mxu0 %v124
    %999 = vmatpush1.msra.mxu0 %v123
    %1000 = vmatprep.subr.mxu0 %v128
    %1001 = vmatpush1.msra.mxu0 %v127
    %1002 = vmatprep.subr.mxu0 %v132
    %1003 = vmatpush1.msra.mxu0 %v131
    %1004 = vmatprep.subr.mxu0 %v136
    %1005 = vmatpush1.msra.mxu0 %v135
    %1006 = vmatprep.subr.mxu0 0.0
    %1007 = vmatpush1.msra.mxu0 0.0
    %1008 = vmatprep.subr.mxu0 0.0
    %1009 = vmatpush1.msra.mxu0 0.0
    %1010 = vmatprep.subr.mxu0 0.0
    %1011 = vmatpush1.msra.mxu0 0.0
    %1012 = vmatprep.subr.mxu0 0.0
    %1013 = vmatpush1.msra.mxu0 0.0
    %1014 = vmatprep.subr.mxu0 0.0
    %1015 = vmatpush1.msra.mxu0 0.0
    %1016 = vmatprep.subr.mxu0 0.0
    %1017 = vmatpush1.msra.mxu0 0.0
    %1018 = vmatprep.subr.mxu0 0.0
    %1019 = vmatpush1.msra.mxu0 0.0
    %1020 = vmatprep.subr.mxu0 0.0
    %1021 = vmatpush1.msra.mxu0 0.0
    %1022 = vmatprep.subr.mxu0 0.0
    %1023 = vmatpush1.msra.mxu0 0.0
    %1024 = vmatprep.subr.mxu0 0.0
    %1025 = vmatpush1.msra.mxu0 0.0
    %1026 = vmatprep.subr.mxu0 0.0
    %1027 = vmatpush1.msra.mxu0 0.0
    %1028 = vmatprep.subr.mxu0 0.0
    %1029 = vmatpush1.msra.mxu0 0.0
    %1030 = vmatprep.subr.mxu0 0.0
    %1031 = vmatpush1.msra.mxu0 0.0
    %1032 = vmatprep.subr.mxu0 0.0
    %1033 = vmatpush1.msra.mxu0 0.0
    %1034 = vmatprep.subr.mxu0 0.0
    %1035 = vmatpush1.msra.mxu0 0.0
    %1036 = vmatprep.subr.mxu0 0.0
    %1037 = vmatpush1.msra.mxu0 0.0
    %1038 = vmatprep.mubr.f32.mxu0 0.0
    %1039 = vmatmul.mubr.f32.gmra.mrb[0].mxu0 0.0
    %v1040 = vpop.f32.mrb[0].mxu0
    %v1041 = vadd.f32 0.0, %v1040
    %v1042 = vpop.f32.mrb[0].mxu0
    %v1043 = vadd.f32 0.0, %v1042
    %1044 = vdwg.mxu0
    %1045 = vmatprep.subr.mxu0 %v78
    %1046 = vmatpush1.msra.mxu0 %v77
    %1047 = vmatprep.subr.mxu0 %v82
    %1048 = vmatpush1.msra.mxu0 %v81
    %1049 = vmatprep.subr.mxu0 %v86
    %1050 = vmatpush1.msra.mxu0 %v85
    %1051 = vmatprep.subr.mxu0 %v90
    %1052 = vmatpush1.msra.mxu0 %v89
    %1053 = vmatprep.subr.mxu0 %v94
    %1054 = vmatpush1.msra.mxu0 %v93
    %1055 = vmatprep.subr.mxu0 %v98
    %1056 = vmatpush1.msra.mxu0 %v97
    %1057 = vmatprep.subr.mxu0 %v102
    %1058 = vmatpush1.msra.mxu0 %v101
    %1059 = vmatprep.subr.mxu0 %v106
    %1060 = vmatpush1.msra.mxu0 %v105
    %1061 = vmatprep.subr.mxu0 %v110
    %1062 = vmatpush1.msra.mxu0 %v109
    %1063 = vmatprep.subr.mxu0 %v114
    %1064 = vmatpush1.msra.mxu0 %v113
    %1065 = vmatprep.subr.mxu0 %v118
    %1066 = vmatpush1.msra.mxu0 %v117
    %1067 = vmatprep.subr.mxu0 %v122
    %1068 = vmatpush1.msra.mxu0 %v121
    %1069 = vmatprep.subr.mxu0 %v126
    %1070 = vmatpush1.msra.mxu0 %v125
    %1071 = vmatprep.subr.mxu0 %v130
    %1072 = vmatpush1.msra.mxu0 %v129
    %1073 = vmatprep.subr.mxu0 %v134
    %1074 = vmatpush1.msra.mxu0 %v133
    %1075 = vmatprep.subr.mxu0 %v138
    %1076 = vmatpush1.msra.mxu0 %v137
    %1077 = vmatprep.subr.mxu0 0.0
    %1078 = vmatpush1.msra.mxu0 0.0
    %1079 = vmatprep.subr.mxu0 0.0
    %1080 = vmatpush1.msra.mxu0 0.0
    %1081 = vmatprep.subr.mxu0 0.0
    %1082 = vmatpush1.msra.mxu0 0.0
    %1083 = vmatprep.subr.mxu0 0.0
    %1084 = vmatpush1.msra.mxu0 0.0
    %1085 = vmatprep.subr.mxu0 0.0
    %1086 = vmatpush1.msra.mxu0 0.0
    %1087 = vmatprep.subr.mxu0 0.0
    %1088 = vmatpush1.msra.mxu0 0.0
    %1089 = vmatprep.subr.mxu0 0.0
    %1090 = vmatpush1.msra.mxu0 0.0
    %1091 = vmatprep.subr.mxu0 0.0
    %1092 = vmatpush1.msra.mxu0 0.0
    %1093 = vmatprep.subr.mxu0 0.0
    %1094 = vmatpush1.msra.mxu0 0.0
    %1095 = vmatprep.subr.mxu0 0.0
    %1096 = vmatpush1.msra.mxu0 0.0
    %1097 = vmatprep.subr.mxu0 0.0
    %1098 = vmatpush1.msra.mxu0 0.0
    %1099 = vmatprep.subr.mxu0 0.0
    %1100 = vmatpush1.msra.mxu0 0.0
    %1101 = vmatprep.subr.mxu0 0.0
    %1102 = vmatpush1.msra.mxu0 0.0
    %1103 = vmatprep.subr.mxu0 0.0
    %1104 = vmatpush1.msra.mxu0 0.0
    %1105 = vmatprep.subr.mxu0 0.0
    %1106 = vmatpush1.msra.mxu0 0.0
    %1107 = vmatprep.subr.mxu0 0.0
    %1108 = vmatpush1.msra.mxu0 0.0
    %1109 = vmatprep.mubr.f32.mxu0 0.0
    %1110 = vmatmul.mubr.f32.gmra.mrb[0].mxu0 0.0
    %v1111 = vpop.f32.mrb[0].mxu0
    %v1112 = vadd.f32 0.0, %v1111
    %v1113 = vpop.f32.mrb[0].mxu0
    %v1114 = vadd.f32 0.0, %v1113
    %1115 = vdwg.mxu0
    %v1116 = vadd.f32 %v970, %v1041
    %v1117 = vadd.f32 %v971, %v1043
    %v1118 = vadd.f32 %v972, %v1112
    %v1119 = vadd.f32 %v973, %v1114
    %v1120 = vmul.f32 %v1116, 0.5
    %v1121 = vmul.f32 %v1117, 0.5
    %v1122 = vtanh.pop %v1120
    %v1123 = vtanh.pop %v1121
    %v1124 = vadd.f32 %v1122, 1.0
    %v1125 = vadd.f32 %v1123, 1.0
    %v1126 = vmul.f32 %v1124, 0.5
    %v1127 = vmul.f32 %v1125, 0.5
    %v1128 = vtanh.pop %v1118
    %v1129 = vmul.f32 %v1119, 0.5
    %v1130 = vtanh.pop %v1129
    %v1131 = vadd.f32 %v1130, 1.0
    %v1132 = vmul.f32 %v1131, 0.5
    %v1133 = vmul.f32 %v1127, 0.0
    %v1134 = vmul.f32 %v1126, %v1128
    %v1135 = vadd.f32 %v1133, %v1134
    %v1136 = vtanh.pop %v1135
    %v1137 = vmul.f32 %v1132, %v1136
    %v1138 = vld [vmem:[%s575] sm:$0xff]
    %v1139 = vld [vmem:[%s575 + $0x8] sm:$0xff]
    %v1140 = vld [vmem:[%s575 + $0x10] sm:$0xff]
    %v1141 = vld [vmem:[%s575 + $0x18] sm:$0xff]
    %1142 = vmatprep.subr.mxu0 %v76
    %1143 = vmatpush1.msra.mxu0 %v75
    %1144 = vmatprep.subr.mxu0 %v80
    %1145 = vmatpush1.msra.mxu0 %v79
    %1146 = vmatprep.subr.mxu0 %v84
    %1147 = vmatpush1.msra.mxu0 %v83
    %1148 = vmatprep.subr.mxu0 %v88
    %1149 = vmatpush1.msra.mxu0 %v87
    %1150 = vmatprep.subr.mxu0 %v92
    %1151 = vmatpush1.msra.mxu0 %v91
    %1152 = vmatprep.subr.mxu0 %v96
    %1153 = vmatpush1.msra.mxu0 %v95
    %1154 = vmatprep.subr.mxu0 %v100
    %1155 = vmatpush1.msra.mxu0 %v99
    %1156 = vmatprep.subr.mxu0 %v104
    %1157 = vmatpush1.msra.mxu0 %v103
    %1158 = vmatprep.subr.mxu0 %v108
    %1159 = vmatpush1.msra.mxu0 %v107
    %1160 = vmatprep.subr.mxu0 %v112
    %1161 = vmatpush1.msra.mxu0 %v111
    %1162 = vmatprep.subr.mxu0 %v116
    %1163 = vmatpush1.msra.mxu0 %v115
    %1164 = vmatprep.subr.mxu0 %v120
    %1165 = vmatpush1.msra.mxu0 %v119
    %1166 = vmatprep.subr.mxu0 %v124
    %1167 = vmatpush1.msra.mxu0 %v123
    %1168 = vmatprep.subr.mxu0 %v128
    %1169 = vmatpush1.msra.mxu0 %v127
    %1170 = vmatprep.subr.mxu0 %v132
    %1171 = vmatpush1.msra.mxu0 %v131
    %1172 = vmatprep.subr.mxu0 %v136
    %1173 = vmatpush1.msra.mxu0 %v135
    %1174 = vmatprep.subr.mxu0 0.0
    %1175 = vmatpush1.msra.mxu0 0.0
    %1176 = vmatprep.subr.mxu0 0.0
    %1177 = vmatpush1.msra.mxu0 0.0
    %1178 = vmatprep.subr.mxu0 0.0
    %1179 = vmatpush1.msra.mxu0 0.0
    %1180 = vmatprep.subr.mxu0 0.0
    %1181 = vmatpush1.msra.mxu0 0.0
    %1182 = vmatprep.subr.mxu0 0.0
    %1183 = vmatpush1.msra.mxu0 0.0
    %1184 = vmatprep.subr.mxu0 0.0
    %1185 = vmatpush1.msra.mxu0 0.0
    %1186 = vmatprep.subr.mxu0 0.0
    %1187 = vmatpush1.msra.mxu0 0.0
    %1188 = vmatprep.subr.mxu0 0.0
    %1189 = vmatpush1.msra.mxu0 0.0
    %1190 = vmatprep.subr.mxu0 0.0
    %1191 = vmatpush1.msra.mxu0 0.0
    %1192 = vmatprep.subr.mxu0 0.0
    %1193 = vmatpush1.msra.mxu0 0.0
    %1194 = vmatprep.subr.mxu0 0.0
    %1195 = vmatpush1.msra.mxu0 0.0
    %1196 = vmatprep.subr.mxu0 0.0
    %1197 = vmatpush1.msra.mxu0 0.0
    %1198 = vmatprep.subr.mxu0 0.0
    %1199 = vmatpush1.msra.mxu0 0.0
    %1200 = vmatprep.subr.mxu0 0.0
    %1201 = vmatpush1.msra.mxu0 0.0
    %1202 = vmatprep.subr.mxu0 0.0
    %1203 = vmatpush1.msra.mxu0 0.0
    %1204 = vmatprep.subr.mxu0 0.0
    %1205 = vmatpush1.msra.mxu0 0.0
    %1206 = vmatprep.mubr.f32.mxu0 0.0
    %1207 = vmatmul.mubr.f32.gmra.mrb[0].mxu0 %v1137
    %v1208 = vpop.f32.mrb[0].mxu0
    %v1209 = vadd.f32 0.0, %v1208
    %v1210 = vpop.f32.mrb[0].mxu0
    %v1211 = vadd.f32 0.0, %v1210
    %1212 = vdwg.mxu0
    %1213 = vmatprep.subr.mxu0 %v78
    %1214 = vmatpush1.msra.mxu0 %v77
    %1215 = vmatprep.subr.mxu0 %v82
    %1216 = vmatpush1.msra.mxu0 %v81
    %1217 = vmatprep.subr.mxu0 %v86
    %1218 = vmatpush1.msra.mxu0 %v85
    %1219 = vmatprep.subr.mxu0 %v90
    %1220 = vmatpush1.msra.mxu0 %v89
    %1221 = vmatprep.subr.mxu0 %v94
    %1222 = vmatpush1.msra.mxu0 %v93
    %1223 = vmatprep.subr.mxu0 %v98
    %1224 = vmatpush1.msra.mxu0 %v97
    %1225 = vmatprep.subr.mxu0 %v102
    %1226 = vmatpush1.msra.mxu0 %v101
    %1227 = vmatprep.subr.mxu0 %v106
    %1228 = vmatpush1.msra.mxu0 %v105
    %1229 = vmatprep.subr.mxu0 %v110
    %1230 = vmatpush1.msra.mxu0 %v109
    %1231 = vmatprep.subr.mxu0 %v114
    %1232 = vmatpush1.msra.mxu0 %v113
    %1233 = vmatprep.subr.mxu0 %v118
    %1234 = vmatpush1.msra.mxu0 %v117
    %1235 = vmatprep.subr.mxu0 %v122
    %1236 = vmatpush1.msra.mxu0 %v121
    %1237 = vmatprep.subr.mxu0 %v126
    %1238 = vmatpush1.msra.mxu0 %v125
    %1239 = vmatprep.subr.mxu0 %v130
    %1240 = vmatpush1.msra.mxu0 %v129
    %1241 = vmatprep.subr.mxu0 %v134
    %1242 = vmatpush1.msra.mxu0 %v133
    %1243 = vmatprep.subr.mxu0 %v138
    %1244 = vmatpush1.msra.mxu0 %v137
    %1245 = vmatprep.subr.mxu0 0.0
    %1246 = vmatpush1.msra.mxu0 0.0
    %1247 = vmatprep.subr.mxu0 0.0
    %1248 = vmatpush1.msra.mxu0 0.0
    %1249 = vmatprep.subr.mxu0 0.0
    %1250 = vmatpush1.msra.mxu0 0.0
    %1251 = vmatprep.subr.mxu0 0.0
    %1252 = vmatpush1.msra.mxu0 0.0
    %1253 = vmatprep.subr.mxu0 0.0
    %1254 = vmatpush1.msra.mxu0 0.0
    %1255 = vmatprep.subr.mxu0 0.0
    %1256 = vmatpush1.msra.mxu0 0.0
    %1257 = vmatprep.subr.mxu0 0.0
    %1258 = vmatpush1.msra.mxu0 0.0
    %1259 = vmatprep.subr.mxu0 0.0
    %1260 = vmatpush1.msra.mxu0 0.0
    %1261 = vmatprep.subr.mxu0 0.0
    %1262 = vmatpush1.msra.mxu0 0.0
    %1263 = vmatprep.subr.mxu0 0.0
    %1264 = vmatpush1.msra.mxu0 0.0
    %1265 = vmatprep.subr.mxu0 0.0
    %1266 = vmatpush1.msra.mxu0 0.0
    %1267 = vmatprep.subr.mxu0 0.0
    %1268 = vmatpush1.msra.mxu0 0.0
    %1269 = vmatprep.subr.mxu0 0.0
    %1270 = vmatpush1.msra.mxu0 0.0
    %1271 = vmatprep.subr.mxu0 0.0
    %1272 = vmatpush1.msra.mxu0 0.0
    %1273 = vmatprep.subr.mxu0 0.0
    %1274 = vmatpush1.msra.mxu0 0.0
    %1275 = vmatprep.subr.mxu0 0.0
    %1276 = vmatpush1.msra.mxu0 0.0
    %1277 = vmatprep.mubr.f32.mxu0 0.0
    %1278 = vmatmul.mubr.f32.gmra.mrb[0].mxu0 %v1137
    %v1279 = vpop.f32.mrb[0].mxu0
    %v1280 = vadd.f32 0.0, %v1279
    %v1281 = vpop.f32.mrb[0].mxu0
    %v1282 = vadd.f32 0.0, %v1281
    %1283 = vdwg.mxu0
    %v1284 = vadd.f32 %v1138, %v1209
    %v1285 = vadd.f32 %v1139, %v1211
    %v1286 = vadd.f32 %v1140, %v1280
    %v1287 = vadd.f32 %v1141, %v1282
    %v1288 = vmul.f32 %v1284, 0.5
    %v1289 = vmul.f32 %v1285, 0.5
    %v1290 = vtanh.pop %v1288
    %v1291 = vtanh.pop %v1289
    %v1292 = vadd.f32 %v1290, 1.0
    %v1293 = vadd.f32 %v1291, 1.0
    %v1294 = vmul.f32 %v1292, 0.5
    %v1295 = vmul.f32 %v1293, 0.5
    %v1296 = vtanh.pop %v1286
    %v1297 = vmul.f32 %v1287, 0.5
    %v1298 = vtanh.pop %v1297
    %v1299 = vadd.f32 %v1298, 1.0
    %v1300 = vmul.f32 %v1299, 0.5
    %v1301 = vmul.f32 %v1295, %v1135
    %v1302 = vmul.f32 %v1294, %v1296
    %v1303 = vadd.f32 %v1301, %v1302
    %v1304 = vtanh.pop %v1303
    %v1305 = vmul.f32 %v1300, %v1304
    %v1306 = vld [vmem:[%s640] sm:$0xff]
    %v1307 = vld [vmem:[%s640 + $0x8] sm:$0xff]
    %v1308 = vld [vmem:[%s640 + $0x10] sm:$0xff]
    %v1309 = vld [vmem:[%s640 + $0x18] sm:$0xff]
    %1310 = vmatprep.subr.mxu0 %v76
    %1311 = vmatpush1.msra.mxu0 %v75
    %1312 = vmatprep.subr.mxu0 %v80
    %1313 = vmatpush1.msra.mxu0 %v79
    %1314 = vmatprep.subr.mxu0 %v84
    %1315 = vmatpush1.msra.mxu0 %v83
    %1316 = vmatprep.subr.mxu0 %v88
    %1317 = vmatpush1.msra.mxu0 %v87
    %1318 = vmatprep.subr.mxu0 %v92
    %1319 = vmatpush1.msra.mxu0 %v91
    %1320 = vmatprep.subr.mxu0 %v96
    %1321 = vmatpush1.msra.mxu0 %v95
    %1322 = vmatprep.subr.mxu0 %v100
    %1323 = vmatpush1.msra.mxu0 %v99
    %1324 = vmatprep.subr.mxu0 %v104
    %1325 = vmatpush1.msra.mxu0 %v103
    %1326 = vmatprep.subr.mxu0 %v108
    %1327 = vmatpush1.msra.mxu0 %v107
    %1328 = vmatprep.subr.mxu0 %v112
    %1329 = vmatpush1.msra.mxu0 %v111
    %1330 = vmatprep.subr.mxu0 %v116
    %1331 = vmatpush1.msra.mxu0 %v115
    %1332 = vmatprep.subr.mxu0 %v120
    %1333 = vmatpush1.msra.mxu0 %v119
    %1334 = vmatprep.subr.mxu0 %v124
    %1335 = vmatpush1.msra.mxu0 %v123
    %1336 = vmatprep.subr.mxu0 %v128
    %1337 = vmatpush1.msra.mxu0 %v127
    %1338 = vmatprep.subr.mxu0 %v132
    %1339 = vmatpush1.msra.mxu0 %v131
    %1340 = vmatprep.subr.mxu0 %v136
    %1341 = vmatpush1.msra.mxu0 %v135
    %1342 = vmatprep.subr.mxu0 0.0
    %1343 = vmatpush1.msra.mxu0 0.0
    %1344 = vmatprep.subr.mxu0 0.0
    %1345 = vmatpush1.msra.mxu0 0.0
    %1346 = vmatprep.subr.mxu0 0.0
    %1347 = vmatpush1.msra.mxu0 0.0
    %1348 = vmatprep.subr.mxu0 0.0
    %1349 = vmatpush1.msra.mxu0 0.0
    %1350 = vmatprep.subr.mxu0 0.0
    %1351 = vmatpush1.msra.mxu0 0.0
    %1352 = vmatprep.subr.mxu0 0.0
    %1353 = vmatpush1.msra.mxu0 0.0
    %1354 = vmatprep.subr.mxu0 0.0
    %1355 = vmatpush1.msra.mxu0 0.0
    %1356 = vmatprep.subr.mxu0 0.0
    %1357 = vmatpush1.msra.mxu0 0.0
    %1358 = vmatprep.subr.mxu0 0.0
    %1359 = vmatpush1.msra.mxu0 0.0
    %1360 = vmatprep.subr.mxu0 0.0
    %1361 = vmatpush1.msra.mxu0 0.0
    %1362 = vmatprep.subr.mxu0 0.0
    %1363 = vmatpush1.msra.mxu0 0.0
    %1364 = vmatprep.subr.mxu0 0.0
    %1365 = vmatpush1.msra.mxu0 0.0
    %1366 = vmatprep.subr.mxu0 0.0
    %1367 = vmatpush1.msra.mxu0 0.0
    %1368 = vmatprep.subr.mxu0 0.0
    %1369 = vmatpush1.msra.mxu0 0.0
    %1370 = vmatprep.subr.mxu0 0.0
    %1371 = vmatpush1.msra.mxu0 0.0
    %1372 = vmatprep.subr.mxu0 0.0
    %1373 = vmatpush1.msra.mxu0 0.0
    %1374 = vmatprep.mubr.f32.mxu0 0.0
    %1375 = vmatmul.mubr.f32.gmra.mrb[0].mxu0 %v1305
    %v1376 = vpop.f32.mrb[0].mxu0
    %v1377 = vadd.f32 0.0, %v1376
    %v1378 = vpop.f32.mrb[0].mxu0
    %v1379 = vadd.f32 0.0, %v1378
    %1380 = vdwg.mxu0
    %1381 = vmatprep.subr.mxu0 %v78
    %1382 = vmatpush1.msra.mxu0 %v77
    %1383 = vmatprep.subr.mxu0 %v82
    %1384 = vmatpush1.msra.mxu0 %v81
    %1385 = vmatprep.subr.mxu0 %v86
    %1386 = vmatpush1.msra.mxu0 %v85
    %1387 = vmatprep.subr.mxu0 %v90
    %1388 = vmatpush1.msra.mxu0 %v89
    %1389 = vmatprep.subr.mxu0 %v94
    %1390 = vmatpush1.msra.mxu0 %v93
    %1391 = vmatprep.subr.mxu0 %v98
    %1392 = vmatpush1.msra.mxu0 %v97
    %1393 = vmatprep.subr.mxu0 %v102
    %1394 = vmatpush1.msra.mxu0 %v101
    %1395 = vmatprep.subr.mxu0 %v106
    %1396 = vmatpush1.msra.mxu0 %v105
    %1397 = vmatprep.subr.mxu0 %v110
    %1398 = vmatpush1.msra.mxu0 %v109
    %1399 = vmatprep.subr.mxu0 %v114
    %1400 = vmatpush1.msra.mxu0 %v113
    %1401 = vmatprep.subr.mxu0 %v118
    %1402 = vmatpush1.msra.mxu0 %v117
    %1403 = vmatprep.subr.mxu0 %v122
    %1404 = vmatpush1.msra.mxu0 %v121
    %1405 = vmatprep.subr.mxu0 %v126
    %1406 = vmatpush1.msra.mxu0 %v125
    %1407 = vmatprep.subr.mxu0 %v130
    %1408 = vmatpush1.msra.mxu0 %v129
    %1409 = vmatprep.subr.mxu0 %v134
    %1410 = vmatpush1.msra.mxu0 %v133
    %1411 = vmatprep.subr.mxu0 %v138
    %1412 = vmatpush1.msra.mxu0 %v137
    %1413 = vmatprep.subr.mxu0 0.0
    %1414 = vmatpush1.msra.mxu0 0.0
    %1415 = vmatprep.subr.mxu0 0.0
    %1416 = vmatpush1.msra.mxu0 0.0
    %1417 = vmatprep.subr.mxu0 0.0
    %1418 = vmatpush1.msra.mxu0 0.0
    %1419 = vmatprep.subr.mxu0 0.0
    %1420 = vmatpush1.msra.mxu0 0.0
    %1421 = vmatprep.subr.mxu0 0.0
    %1422 = vmatpush1.msra.mxu0 0.0
    %1423 = vmatprep.subr.mxu0 0.0
    %1424 = vmatpush1.msra.mxu0 0.0
    %1425 = vmatprep.subr.mxu0 0.0
    %1426 = vmatpush1.msra.mxu0 0.0
    %1427 = vmatprep.subr.mxu0 0.0
    %1428 = vmatpush1.msra.mxu0 0.0
    %1429 = vmatprep.subr.mxu0 0.0
    %1430 = vmatpush1.msra.mxu0 0.0
    %1431 = vmatprep.subr.mxu0 0.0
    %1432 = vmatpush1.msra.mxu0 0.0
    %1433 = vmatprep.subr.mxu0 0.0
    %1434 = vmatpush1.msra.mxu0 0.0
    %1435 = vmatprep.subr.mxu0 0.0
    %1436 = vmatpush1.msra.mxu0 0.0
    %1437 = vmatprep.subr.mxu0 0.0
    %1438 = vmatpush1.msra.mxu0 0.0
    %1439 = vmatprep.subr.mxu0 0.0
    %1440 = vmatpush1.msra.mxu0 0.0
    %1441 = vmatprep.subr.mxu0 0.0
    %1442 = vmatpush1.msra.mxu0 0.0
    %1443 = vmatprep.subr.mxu0 0.0
    %1444 = vmatpush1.msra.mxu0 0.0
    %1445 = vmatprep.mubr.f32.mxu0 0.0
    %1446 = vmatmul.mubr.f32.gmra.mrb[0].mxu0 %v1305
    %v1447 = vpop.f32.mrb[0].mxu0
    %v1448 = vadd.f32 0.0, %v1447
    %v1449 = vpop.f32.mrb[0].mxu0
    %v1450 = vadd.f32 0.0, %v1449
    %1451 = vdwg.mxu0
    %v1452 = vadd.f32 %v1306, %v1377
    %v1453 = vadd.f32 %v1307, %v1379
    %v1454 = vadd.f32 %v1308, %v1448
    %v1455 = vadd.f32 %v1309, %v1450
    %v1456 = vmul.f32 %v1452, 0.5
    %v1457 = vmul.f32 %v1453, 0.5
    %v1458 = vtanh.pop %v1456
    %v1459 = vtanh.pop %v1457
    %v1460 = vadd.f32 %v1458, 1.0
    %v1461 = vadd.f32 %v1459, 1.0
    %v1462 = vmul.f32 %v1460, 0.5
    %v1463 = vmul.f32 %v1461, 0.5
    %v1464 = vtanh.pop %v1454
    %v1465 = vmul.f32 %v1455, 0.5
    %v1466 = vtanh.pop %v1465
    %v1467 = vadd.f32 %v1466, 1.0
    %v1468 = vmul.f32 %v1467, 0.5
    %v1469 = vmul.f32 %v1463, %v1303
    %v1470 = vmul.f32 %v1462, %v1464
    %v1471 = vadd.f32 %v1469, %v1470
    %v1472 = vtanh.pop %v1471
    %v1473 = vmul.f32 %v1468, %v1472
    %v1474 = vld [vmem:[%s705] sm:$0xff]
    %v1475 = vld [vmem:[%s705 + $0x8] sm:$0xff]
    %v1476 = vld [vmem:[%s705 + $0x10] sm:$0xff]
    %v1477 = vld [vmem:[%s705 + $0x18] sm:$0xff]
    %1478 = vmatprep.subr.mxu0 %v76
    %1479 = vmatpush1.msra.mxu0 %v75
    %1480 = vmatprep.subr.mxu0 %v80
    %1481 = vmatpush1.msra.mxu0 %v79
    %1482 = vmatprep.subr.mxu0 %v84
    %1483 = vmatpush1.msra.mxu0 %v83
    %1484 = vmatprep.subr.mxu0 %v88
    %1485 = vmatpush1.msra.mxu0 %v87
    %1486 = vmatprep.subr.mxu0 %v92
    %1487 = vmatpush1.msra.mxu0 %v91
    %1488 = vmatprep.subr.mxu0 %v96
    %1489 = vmatpush1.msra.mxu0 %v95
    %1490 = vmatprep.subr.mxu0 %v100
    %1491 = vmatpush1.msra.mxu0 %v99
    %1492 = vmatprep.subr.mxu0 %v104
    %1493 = vmatpush1.msra.mxu0 %v103
    %1494 = vmatprep.subr.mxu0 %v108
    %1495 = vmatpush1.msra.mxu0 %v107
    %1496 = vmatprep.subr.mxu0 %v112
    %1497 = vmatpush1.msra.mxu0 %v111
    %1498 = vmatprep.subr.mxu0 %v116
    %1499 = vmatpush1.msra.mxu0 %v115
    %1500 = vmatprep.subr.mxu0 %v120
    %1501 = vmatpush1.msra.mxu0 %v119
    %1502 = vmatprep.subr.mxu0 %v124
    %1503 = vmatpush1.msra.mxu0 %v123
    %1504 = vmatprep.subr.mxu0 %v128
    %1505 = vmatpush1.msra.mxu0 %v127
    %1506 = vmatprep.subr.mxu0 %v132
    %1507 = vmatpush1.msra.mxu0 %v131
    %1508 = vmatprep.subr.mxu0 %v136
    %1509 = vmatpush1.msra.mxu0 %v135
    %1510 = vmatprep.subr.mxu0 0.0
    %1511 = vmatpush1.msra.mxu0 0.0
    %1512 = vmatprep.subr.mxu0 0.0
    %1513 = vmatpush1.msra.mxu0 0.0
    %1514 = vmatprep.subr.mxu0 0.0
    %1515 = vmatpush1.msra.mxu0 0.0
    %1516 = vmatprep.subr.mxu0 0.0
    %1517 = vmatpush1.msra.mxu0 0.0
    %1518 = vmatprep.subr.mxu0 0.0
    %1519 = vmatpush1.msra.mxu0 0.0
    %1520 = vmatprep.subr.mxu0 0.0
    %1521 = vmatpush1.msra.mxu0 0.0
    %1522 = vmatprep.subr.mxu0 0.0
    %1523 = vmatpush1.msra.mxu0 0.0
    %1524 = vmatprep.subr.mxu0 0.0
    %1525 = vmatpush1.msra.mxu0 0.0
    %1526 = vmatprep.subr.mxu0 0.0
    %1527 = vmatpush1.msra.mxu0 0.0
    %1528 = vmatprep.subr.mxu0 0.0
    %1529 = vmatpush1.msra.mxu0 0.0
    %1530 = vmatprep.subr.mxu0 0.0
    %1531 = vmatpush1.msra.mxu0 0.0
    %1532 = vmatprep.subr.mxu0 0.0
    %1533 = vmatpush1.msra.mxu0 0.0
    %1534 = vmatprep.subr.mxu0 0.0
    %1535 = vmatpush1.msra.mxu0 0.0
    %1536 = vmatprep.subr.mxu0 0.0
    %1537 = vmatpush1.msra.mxu0 0.0
    %1538 = vmatprep.subr.mxu0 0.0
    %1539 = vmatpush1.msra.mxu0 0.0
    %1540 = vmatprep.subr.mxu0 0.0
    %1541 = vmatpush1.msra.mxu0 0.0
    %1542 = vmatprep.mubr.f32.mxu0 0.0
    %1543 = vmatmul.mubr.f32.gmra.mrb[0].mxu0 %v1473
    %v1544 = vpop.f32.mrb[0].mxu0
    %v1545 = vadd.f32 0.0, %v1544
    %v1546 = vpop.f32.mrb[0].mxu0
    %v1547 = vadd.f32 0.0, %v1546
    %1548 = vdwg.mxu0
    %1549 = vmatprep.subr.mxu0 %v78
    %1550 = vmatpush1.msra.mxu0 %v77
    %1551 = vmatprep.subr.mxu0 %v82
    %1552 = vmatpush1.msra.mxu0 %v81
    %1553 = vmatprep.subr.mxu0 %v86
    %1554 = vmatpush1.msra.mxu0 %v85
    %1555 = vmatprep.subr.mxu0 %v90
    %1556 = vmatpush1.msra.mxu0 %v89
    %1557 = vmatprep.subr.mxu0 %v94
    %1558 = vmatpush1.msra.mxu0 %v93
    %1559 = vmatprep.subr.mxu0 %v98
    %1560 = vmatpush1.msra.mxu0 %v97
    %1561 = vmatprep.subr.mxu0 %v102
    %1562 = vmatpush1.msra.mxu0 %v101
    %1563 = vmatprep.subr.mxu0 %v106
    %1564 = vmatpush1.msra.mxu0 %v105
    %1565 = vmatprep.subr.mxu0 %v110
    %1566 = vmatpush1.msra.mxu0 %v109
    %1567 = vmatprep.subr.mxu0 %v114
    %1568 = vmatpush1.msra.mxu0 %v113
    %1569 = vmatprep.subr.mxu0 %v118
    %1570 = vmatpush1.msra.mxu0 %v117
    %1571 = vmatprep.subr.mxu0 %v122
    %1572 = vmatpush1.msra.mxu0 %v121
    %1573 = vmatprep.subr.mxu0 %v126
    %1574 = vmatpush1.msra.mxu0 %v125
    %1575 = vmatprep.subr.mxu0 %v130
    %1576 = vmatpush1.msra.mxu0 %v129
    %1577 = vmatprep.subr.mxu0 %v134
    %1578 = vmatpush1.msra.mxu0 %v133
    %1579 = vmatprep.subr.mxu0 %v138
    %1580 = vmatpush1.msra.mxu0 %v137
    %1581 = vmatprep.subr.mxu0 0.0
    %1582 = vmatpush1.msra.mxu0 0.0
    %1583 = vmatprep.subr.mxu0 0.0
    %1584 = vmatpush1.msra.mxu0 0.0
    %1585 = vmatprep.subr.mxu0 0.0
    %1586 = vmatpush1.msra.mxu0 0.0
    %1587 = vmatprep.subr.mxu0 0.0
    %1588 = vmatpush1.msra.mxu0 0.0
    %1589 = vmatprep.subr.mxu0 0.0
    %1590 = vmatpush1.msra.mxu0 0.0
    %1591 = vmatprep.subr.mxu0 0.0
    %1592 = vmatpush1.msra.mxu0 0.0
    %1593 = vmatprep.subr.mxu0 0.0
    %1594 = vmatpush1.msra.mxu0 0.0
    %1595 = vmatprep.subr.mxu0 0.0
    %1596 = vmatpush1.msra.mxu0 0.0
    %1597 = vmatprep.subr.mxu0 0.0
    %1598 = vmatpush1.msra.mxu0 0.0
    %1599 = vmatprep.subr.mxu0 0.0
    %1600 = vmatpush1.msra.mxu0 0.0
    %1601 = vmatprep.subr.mxu0 0.0
    %1602 = vmatpush1.msra.mxu0 0.0
    %1603 = vmatprep.subr.mxu0 0.0
    %1604 = vmatpush1.msra.mxu0 0.0
    %1605 = vmatprep.subr.mxu0 0.0
    %1606 = vmatpush1.msra.mxu0 0.0
    %1607 = vmatprep.subr.mxu0 0.0
    %1608 = vmatpush1.msra.mxu0 0.0
    %1609 = vmatprep.subr.mxu0 0.0
    %1610 = vmatpush1.msra.mxu0 0.0
    %1611 = vmatprep.subr.mxu0 0.0
    %1612 = vmatpush1.msra.mxu0 0.0
    %1613 = vmatprep.mubr.f32.mxu0 0.0
    %1614 = vmatmul.mubr.f32.gmra.mrb[0].mxu0 %v1473
    %v1615 = vpop.f32.mrb[0].mxu0
    %v1616 = vadd.f32 0.0, %v1615
    %v1617 = vpop.f32.mrb[0].mxu0
    %v1618 = vadd.f32 0.0, %v1617
    %1619 = vdwg.mxu0
    %v1620 = vadd.f32 %v1474, %v1545
    %v1621 = vadd.f32 %v1475, %v1547
    %v1622 = vadd.f32 %v1476, %v1616
    %v1623 = vadd.f32 %v1477, %v1618
    %v1624 = vmul.f32 %v1620, 0.5
    %v1625 = vmul.f32 %v1621, 0.5
    %v1626 = vtanh.pop %v1624
    %v1627 = vtanh.pop %v1625
    %v1628 = vadd.f32 %v1626, 1.0
    %v1629 = vadd.f32 %v1627, 1.0
    %v1630 = vmul.f32 %v1628, 0.5
    %v1631 = vmul.f32 %v1629, 0.5
    %v1632 = vtanh.pop %v1622
    %v1633 = vmul.f32 %v1623, 0.5
    %v1634 = vtanh.pop %v1633
    %v1635 = vadd.f32 %v1634, 1.0
    %v1636 = vmul.f32 %v1635, 0.5
    %v1637 = vmul.f32 %v1631, %v1471
    %v1638 = vmul.f32 %v1630, %v1632
    %v1639 = vadd.f32 %v1637, %v1638
    %v1640 = vtanh.pop %v1639
    %v1641 = vmul.f32 %v1636, %v1640
    %v1642 = vld [vmem:[%s770] sm:$0xff]
    %v1643 = vld [vmem:[%s770 + $0x8] sm:$0xff]
    %v1644 = vld [vmem:[%s770 + $0x10] sm:$0xff]
    %v1645 = vld [vmem:[%s770 + $0x18] sm:$0xff]
    %1646 = vmatprep.subr.mxu0 %v76
    %1647 = vmatpush1.msra.mxu0 %v75
    %1648 = vmatprep.subr.mxu0 %v80
    %1649 = vmatpush1.msra.mxu0 %v79
    %1650 = vmatprep.subr.mxu0 %v84
    %1651 = vmatpush1.msra.mxu0 %v83
    %1652 = vmatprep.subr.mxu0 %v88
    %1653 = vmatpush1.msra.mxu0 %v87
    %1654 = vmatprep.subr.mxu0 %v92
    %1655 = vmatpush1.msra.mxu0 %v91
    %1656 = vmatprep.subr.mxu0 %v96
    %1657 = vmatpush1.msra.mxu0 %v95
    %1658 = vmatprep.subr.mxu0 %v100
    %1659 = vmatpush1.msra.mxu0 %v99
    %1660 = vmatprep.subr.mxu0 %v104
    %1661 = vmatpush1.msra.mxu0 %v103
    %1662 = vmatprep.subr.mxu0 %v108
    %1663 = vmatpush1.msra.mxu0 %v107
    %1664 = vmatprep.subr.mxu0 %v112
    %1665 = vmatpush1.msra.mxu0 %v111
    %1666 = vmatprep.subr.mxu0 %v116
    %1667 = vmatpush1.msra.mxu0 %v115
    %1668 = vmatprep.subr.mxu0 %v120
    %1669 = vmatpush1.msra.mxu0 %v119
    %1670 = vmatprep.subr.mxu0 %v124
    %1671 = vmatpush1.msra.mxu0 %v123
    %1672 = vmatprep.subr.mxu0 %v128
    %1673 = vmatpush1.msra.mxu0 %v127
    %1674 = vmatprep.subr.mxu0 %v132
    %1675 = vmatpush1.msra.mxu0 %v131
    %1676 = vmatprep.subr.mxu0 %v136
    %1677 = vmatpush1.msra.mxu0 %v135
    %1678 = vmatprep.subr.mxu0 0.0
    %1679 = vmatpush1.msra.mxu0 0.0
    %1680 = vmatprep.subr.mxu0 0.0
    %1681 = vmatpush1.msra.mxu0 0.0
    %1682 = vmatprep.subr.mxu0 0.0
    %1683 = vmatpush1.msra.mxu0 0.0
    %1684 = vmatprep.subr.mxu0 0.0
    %1685 = vmatpush1.msra.mxu0 0.0
    %1686 = vmatprep.subr.mxu0 0.0
    %1687 = vmatpush1.msra.mxu0 0.0
    %1688 = vmatprep.subr.mxu0 0.0
    %1689 = vmatpush1.msra.mxu0 0.0
    %1690 = vmatprep.subr.mxu0 0.0
    %1691 = vmatpush1.msra.mxu0 0.0
    %1692 = vmatprep.subr.mxu0 0.0
    %1693 = vmatpush1.msra.mxu0 0.0
    %1694 = vmatprep.subr.mxu0 0.0
    %1695 = vmatpush1.msra.mxu0 0.0
    %1696 = vmatprep.subr.mxu0 0.0
    %1697 = vmatpush1.msra.mxu0 0.0
    %1698 = vmatprep.subr.mxu0 0.0
    %1699 = vmatpush1.msra.mxu0 0.0
    %1700 = vmatprep.subr.mxu0 0.0
    %1701 = vmatpush1.msra.mxu0 0.0
    %1702 = vmatprep.subr.mxu0 0.0
    %1703 = vmatpush1.msra.mxu0 0.0
    %1704 = vmatprep.subr.mxu0 0.0
    %1705 = vmatpush1.msra.mxu0 0.0
    %1706 = vmatprep.subr.mxu0 0.0
    %1707 = vmatpush1.msra.mxu0 0.0
    %1708 = vmatprep.subr.mxu0 0.0
    %1709 = vmatpush1.msra.mxu0 0.0
    %1710 = vmatprep.mubr.f32.mxu0 0.0
    %1711 = vmatmul.mubr.f32.gmra.mrb[0].mxu0 %v1641
    %v1712 = vpop.f32.mrb[0].mxu0
    %v1713 = vadd.f32 0.0, %v1712
    %v1714 = vpop.f32.mrb[0].mxu0
    %v1715 = vadd.f32 0.0, %v1714
    %1716 = vdwg.mxu0
    %1717 = vmatprep.subr.mxu0 %v78
    %1718 = vmatpush1.msra.mxu0 %v77
    %1719 = vmatprep.subr.mxu0 %v82
    %1720 = vmatpush1.msra.mxu0 %v81
    %1721 = vmatprep.subr.mxu0 %v86
    %1722 = vmatpush1.msra.mxu0 %v85
    %1723 = vmatprep.subr.mxu0 %v90
    %1724 = vmatpush1.msra.mxu0 %v89
    %1725 = vmatprep.subr.mxu0 %v94
    %1726 = vmatpush1.msra.mxu0 %v93
    %1727 = vmatprep.subr.mxu0 %v98
    %1728 = vmatpush1.msra.mxu0 %v97
    %1729 = vmatprep.subr.mxu0 %v102
    %1730 = vmatpush1.msra.mxu0 %v101
    %1731 = vmatprep.subr.mxu0 %v106
    %1732 = vmatpush1.msra.mxu0 %v105
    %1733 = vmatprep.subr.mxu0 %v110
    %1734 = vmatpush1.msra.mxu0 %v109
    %1735 = vmatprep.subr.mxu0 %v114
    %1736 = vmatpush1.msra.mxu0 %v113
    %1737 = vmatprep.subr.mxu0 %v118
    %1738 = vmatpush1.msra.mxu0 %v117
    %1739 = vmatprep.subr.mxu0 %v122
    %1740 = vmatpush1.msra.mxu0 %v121
    %1741 = vmatprep.subr.mxu0 %v126
    %1742 = vmatpush1.msra.mxu0 %v125
    %1743 = vmatprep.subr.mxu0 %v130
    %1744 = vmatpush1.msra.mxu0 %v129
    %1745 = vmatprep.subr.mxu0 %v134
    %1746 = vmatpush1.msra.mxu0 %v133
    %1747 = vmatprep.subr.mxu0 %v138
    %1748 = vmatpush1.msra.mxu0 %v137
    %1749 = vmatprep.subr.mxu0 0.0
    %1750 = vmatpush1.msra.mxu0 0.0
    %1751 = vmatprep.subr.mxu0 0.0
    %1752 = vmatpush1.msra.mxu0 0.0
    %1753 = vmatprep.subr.mxu0 0.0
    %1754 = vmatpush1.msra.mxu0 0.0
    %1755 = vmatprep.subr.mxu0 0.0
    %1756 = vmatpush1.msra.mxu0 0.0
    %1757 = vmatprep.subr.mxu0 0.0
    %1758 = vmatpush1.msra.mxu0 0.0
    %1759 = vmatprep.subr.mxu0 0.0
    %1760 = vmatpush1.msra.mxu0 0.0
    %1761 = vmatprep.subr.mxu0 0.0
    %1762 = vmatpush1.msra.mxu0 0.0
    %1763 = vmatprep.subr.mxu0 0.0
    %1764 = vmatpush1.msra.mxu0 0.0
    %1765 = vmatprep.subr.mxu0 0.0
    %1766 = vmatpush1.msra.mxu0 0.0
    %1767 = vmatprep.subr.mxu0 0.0
    %1768 = vmatpush1.msra.mxu0 0.0
    %1769 = vmatprep.subr.mxu0 0.0
    %1770 = vmatpush1.msra.mxu0 0.0
    %1771 = vmatprep.subr.mxu0 0.0
    %1772 = vmatpush1.msra.mxu0 0.0
    %1773 = vmatprep.subr.mxu0 0.0
    %1774 = vmatpush1.msra.mxu0 0.0
    %1775 = vmatprep.subr.mxu0 0.0
    %1776 = vmatpush1.msra.mxu0 0.0
    %1777 = vmatprep.subr.mxu0 0.0
    %1778 = vmatpush1.msra.mxu0 0.0
    %1779 = vmatprep.subr.mxu0 0.0
    %1780 = vmatpush1.msra.mxu0 0.0
    %1781 = vmatprep.mubr.f32.mxu0 0.0
    %1782 = vmatmul.mubr.f32.gmra.mrb[0].mxu0 %v1641
    %v1783 = vpop.f32.mrb[0].mxu0
    %v1784 = vadd.f32 0.0, %v1783
    %v1785 = vpop.f32.mrb[0].mxu0
    %v1786 = vadd.f32 0.0, %v1785
    %1787 = vdwg.mxu0
    %v1788 = vadd.f32 %v1642, %v1713
    %v1789 = vadd.f32 %v1643, %v1715
    %v1790 = vadd.f32 %v1644, %v1784
    %v1791 = vadd.f32 %v1645, %v1786
    %v1792 = vmul.f32 %v1788, 0.5
    %v1793 = vmul.f32 %v1789, 0.5
    %v1794 = vtanh.pop %v1792
    %v1795 = vtanh.pop %v1793
    %v1796 = vadd.f32 %v1794, 1.0
    %v1797 = vadd.f32 %v1795, 1.0
    %v1798 = vmul.f32 %v1796, 0.5
    %v1799 = vmul.f32 %v1797, 0.5
    %v1800 = vtanh.pop %v1790
    %v1801 = vmul.f32 %v1791, 0.5
    %v1802 = vtanh.pop %v1801
    %v1803 = vadd.f32 %v1802, 1.0
    %v1804 = vmul.f32 %v1803, 0.5
    %v1805 = vmul.f32 %v1799, %v1639
    %v1806 = vmul.f32 %v1798, %v1800
    %v1807 = vadd.f32 %v1805, %v1806
    %v1808 = vtanh.pop %v1807
    %v1809 = vmul.f32 %v1804, %v1808
    %v1810 = vld [vmem:[%s835] sm:$0xff]
    %v1811 = vld [vmem:[%s835 + $0x8] sm:$0xff]
    %v1812 = vld [vmem:[%s835 + $0x10] sm:$0xff]
    %v1813 = vld [vmem:[%s835 + $0x18] sm:$0xff]
    %1814 = vmatprep.subr.mxu0 %v76
    %1815 = vmatpush1.msra.mxu0 %v75
    %1816 = vmatprep.subr.mxu0 %v80
    %1817 = vmatpush1.msra.mxu0 %v79
    %1818 = vmatprep.subr.mxu0 %v84
    %1819 = vmatpush1.msra.mxu0 %v83
    %1820 = vmatprep.subr.mxu0 %v88
    %1821 = vmatpush1.msra.mxu0 %v87
    %1822 = vmatprep.subr.mxu0 %v92
    %1823 = vmatpush1.msra.mxu0 %v91
    %1824 = vmatprep.subr.mxu0 %v96
    %1825 = vmatpush1.msra.mxu0 %v95
    %1826 = vmatprep.subr.mxu0 %v100
    %1827 = vmatpush1.msra.mxu0 %v99
    %1828 = vmatprep.subr.mxu0 %v104
    %1829 = vmatpush1.msra.mxu0 %v103
    %1830 = vmatprep.subr.mxu0 %v108
    %1831 = vmatpush1.msra.mxu0 %v107
    %1832 = vmatprep.subr.mxu0 %v112
    %1833 = vmatpush1.msra.mxu0 %v111
    %1834 = vmatprep.subr.mxu0 %v116
    %1835 = vmatpush1.msra.mxu0 %v115
    %1836 = vmatprep.subr.mxu0 %v120
    %1837 = vmatpush1.msra.mxu0 %v119
    %1838 = vmatprep.subr.mxu0 %v124
    %1839 = vmatpush1.msra.mxu0 %v123
    %1840 = vmatprep.subr.mxu0 %v128
    %1841 = vmatpush1.msra.mxu0 %v127
    %1842 = vmatprep.subr.mxu0 %v132
    %1843 = vmatpush1.msra.mxu0 %v131
    %1844 = vmatprep.subr.mxu0 %v136
    %1845 = vmatpush1.msra.mxu0 %v135
    %1846 = vmatprep.subr.mxu0 0.0
    %1847 = vmatpush1.msra.mxu0 0.0
    %1848 = vmatprep.subr.mxu0 0.0
    %1849 = vmatpush1.msra.mxu0 0.0
    %1850 = vmatprep.subr.mxu0 0.0
    %1851 = vmatpush1.msra.mxu0 0.0
    %1852 = vmatprep.subr.mxu0 0.0
    %1853 = vmatpush1.msra.mxu0 0.0
    %1854 = vmatprep.subr.mxu0 0.0
    %1855 = vmatpush1.msra.mxu0 0.0
    %1856 = vmatprep.subr.mxu0 0.0
    %1857 = vmatpush1.msra.mxu0 0.0
    %1858 = vmatprep.subr.mxu0 0.0
    %1859 = vmatpush1.msra.mxu0 0.0
    %1860 = vmatprep.subr.mxu0 0.0
    %1861 = vmatpush1.msra.mxu0 0.0
    %1862 = vmatprep.subr.mxu0 0.0
    %1863 = vmatpush1.msra.mxu0 0.0
    %1864 = vmatprep.subr.mxu0 0.0
    %1865 = vmatpush1.msra.mxu0 0.0
    %1866 = vmatprep.subr.mxu0 0.0
    %1867 = vmatpush1.msra.mxu0 0.0
    %1868 = vmatprep.subr.mxu0 0.0
    %1869 = vmatpush1.msra.mxu0 0.0
    %1870 = vmatprep.subr.mxu0 0.0
    %1871 = vmatpush1.msra.mxu0 0.0
    %1872 = vmatprep.subr.mxu0 0.0
    %1873 = vmatpush1.msra.mxu0 0.0
    %1874 = vmatprep.subr.mxu0 0.0
    %1875 = vmatpush1.msra.mxu0 0.0
    %1876 = vmatprep.subr.mxu0 0.0
    %1877 = vmatpush1.msra.mxu0 0.0
    %1878 = vmatprep.mubr.f32.mxu0 0.0
    %1879 = vmatmul.mubr.f32.gmra.mrb[0].mxu0 %v1809
    %v1880 = vpop.f32.mrb[0].mxu0
    %v1881 = vadd.f32 0.0, %v1880
    %v1882 = vpop.f32.mrb[0].mxu0
    %v1883 = vadd.f32 0.0, %v1882
    %1884 = vdwg.mxu0
    %1885 = vmatprep.subr.mxu0 %v78
    %1886 = vmatpush1.msra.mxu0 %v77
    %1887 = vmatprep.subr.mxu0 %v82
    %1888 = vmatpush1.msra.mxu0 %v81
    %1889 = vmatprep.subr.mxu0 %v86
    %1890 = vmatpush1.msra.mxu0 %v85
    %1891 = vmatprep.subr.mxu0 %v90
    %1892 = vmatpush1.msra.mxu0 %v89
    %1893 = vmatprep.subr.mxu0 %v94
    %1894 = vmatpush1.msra.mxu0 %v93
    %1895 = vmatprep.subr.mxu0 %v98
    %1896 = vmatpush1.msra.mxu0 %v97
    %1897 = vmatprep.subr.mxu0 %v102
    %1898 = vmatpush1.msra.mxu0 %v101
    %1899 = vmatprep.subr.mxu0 %v106
    %1900 = vmatpush1.msra.mxu0 %v105
    %1901 = vmatprep.subr.mxu0 %v110
    %1902 = vmatpush1.msra.mxu0 %v109
    %1903 = vmatprep.subr.mxu0 %v114
    %1904 = vmatpush1.msra.mxu0 %v113
    %1905 = vmatprep.subr.mxu0 %v118
    %1906 = vmatpush1.msra.mxu0 %v117
    %1907 = vmatprep.subr.mxu0 %v122
    %1908 = vmatpush1.msra.mxu0 %v121
    %1909 = vmatprep.subr.mxu0 %v126
    %1910 = vmatpush1.msra.mxu0 %v125
    %1911 = vmatprep.subr.mxu0 %v130
    %1912 = vmatpush1.msra.mxu0 %v129
    %1913 = vmatprep.subr.mxu0 %v134
    %1914 = vmatpush1.msra.mxu0 %v133
    %1915 = vmatprep.subr.mxu0 %v138
    %1916 = vmatpush1.msra.mxu0 %v137
    %1917 = vmatprep.subr.mxu0 0.0
    %1918 = vmatpush1.msra.mxu0 0.0
    %1919 = vmatprep.subr.mxu0 0.0
    %1920 = vmatpush1.msra.mxu0 0.0
    %1921 = vmatprep.subr.mxu0 0.0
    %1922 = vmatpush1.msra.mxu0 0.0
    %1923 = vmatprep.subr.mxu0 0.0
    %1924 = vmatpush1.msra.mxu0 0.0
    %1925 = vmatprep.subr.mxu0 0.0
    %1926 = vmatpush1.msra.mxu0 0.0
    %1927 = vmatprep.subr.mxu0 0.0
    %1928 = vmatpush1.msra.mxu0 0.0
    %1929 = vmatprep.subr.mxu0 0.0
    %1930 = vmatpush1.msra.mxu0 0.0
    %1931 = vmatprep.subr.mxu0 0.0
    %1932 = vmatpush1.msra.mxu0 0.0
    %1933 = vmatprep.subr.mxu0 0.0
    %1934 = vmatpush1.msra.mxu0 0.0
    %1935 = vmatprep.subr.mxu0 0.0
    %1936 = vmatpush1.msra.mxu0 0.0
    %1937 = vmatprep.subr.mxu0 0.0
    %1938 = vmatpush1.msra.mxu0 0.0
    %1939 = vmatprep.subr.mxu0 0.0
    %1940 = vmatpush1.msra.mxu0 0.0
    %1941 = vmatprep.subr.mxu0 0.0
    %1942 = vmatpush1.msra.mxu0 0.0
    %1943 = vmatprep.subr.mxu0 0.0
    %1944 = vmatpush1.msra.mxu0 0.0
    %1945 = vmatprep.subr.mxu0 0.0
    %1946 = vmatpush1.msra.mxu0 0.0
    %1947 = vmatprep.subr.mxu0 0.0
    %1948 = vmatpush1.msra.mxu0 0.0
    %1949 = vmatprep.mubr.f32.mxu0 0.0
    %1950 = vmatmul.mubr.f32.gmra.mrb[0].mxu0 %v1809
    %v1951 = vpop.f32.mrb[0].mxu0
    %v1952 = vadd.f32 0.0, %v1951
    %v1953 = vpop.f32.mrb[0].mxu0
    %v1954 = vadd.f32 0.0, %v1953
    %1955 = vdwg.mxu0
    %v1956 = vadd.f32 %v1810, %v1881
    %v1957 = vadd.f32 %v1811, %v1883
    %v1958 = vadd.f32 %v1812, %v1952
    %v1959 = vadd.f32 %v1813, %v1954
    %v1960 = vmul.f32 %v1956, 0.5
    %v1961 = vmul.f32 %v1957, 0.5
    %v1962 = vtanh.pop %v1960
    %v1963 = vtanh.pop %v1961
    %v1964 = vadd.f32 %v1962, 1.0
    %v1965 = vadd.f32 %v1963, 1.0
    %v1966 = vmul.f32 %v1964, 0.5
    %v1967 = vmul.f32 %v1965, 0.5
    %v1968 = vtanh.pop %v1958
    %v1969 = vmul.f32 %v1959, 0.5
    %v1970 = vtanh.pop %v1969
    %v1971 = vadd.f32 %v1970, 1.0
    %v1972 = vmul.f32 %v1971, 0.5
    %v1973 = vmul.f32 %v1967, %v1807
    %v1974 = vmul.f32 %v1966, %v1968
    %v1975 = vadd.f32 %v1973, %v1974
    %v1976 = vtanh.pop %v1975
    %v1977 = vmul.f32 %v1972, %v1976
    %v1978 = vld [vmem:[%s900] sm:$0xff]
    %v1979 = vld [vmem:[%s900 + $0x8] sm:$0xff]
    %v1980 = vld [vmem:[%s900 + $0x10] sm:$0xff]
    %v1981 = vld [vmem:[%s900 + $0x18] sm:$0xff]
    %1982 = vmatprep.subr.mxu0 %v76
    %1983 = vmatpush1.msra.mxu0 %v75
    %1984 = vmatprep.subr.mxu0 %v80
    %1985 = vmatpush1.msra.mxu0 %v79
    %1986 = vmatprep.subr.mxu0 %v84
    %1987 = vmatpush1.msra.mxu0 %v83
    %1988 = vmatprep.subr.mxu0 %v88
    %1989 = vmatpush1.msra.mxu0 %v87
    %1990 = vmatprep.subr.mxu0 %v92
    %1991 = vmatpush1.msra.mxu0 %v91
    %1992 = vmatprep.subr.mxu0 %v96
    %1993 = vmatpush1.msra.mxu0 %v95
    %1994 = vmatprep.subr.mxu0 %v100
    %1995 = vmatpush1.msra.mxu0 %v99
    %1996 = vmatprep.subr.mxu0 %v104
    %1997 = vmatpush1.msra.mxu0 %v103
    %1998 = vmatprep.subr.mxu0 %v108
    %1999 = vmatpush1.msra.mxu0 %v107
    %2000 = vmatprep.subr.mxu0 %v112
    %2001 = vmatpush1.msra.mxu0 %v111
    %2002 = vmatprep.subr.mxu0 %v116
    %2003 = vmatpush1.msra.mxu0 %v115
    %2004 = vmatprep.subr.mxu0 %v120
    %2005 = vmatpush1.msra.mxu0 %v119
    %2006 = vmatprep.subr.mxu0 %v124
    %2007 = vmatpush1.msra.mxu0 %v123
    %2008 = vmatprep.subr.mxu0 %v128
    %2009 = vmatpush1.msra.mxu0 %v127
    %2010 = vmatprep.subr.mxu0 %v132
    %2011 = vmatpush1.msra.mxu0 %v131
    %2012 = vmatprep.subr.mxu0 %v136
    %2013 = vmatpush1.msra.mxu0 %v135
    %2014 = vmatprep.subr.mxu0 0.0
    %2015 = vmatpush1.msra.mxu0 0.0
    %2016 = vmatprep.subr.mxu0 0.0
    %2017 = vmatpush1.msra.mxu0 0.0
    %2018 = vmatprep.subr.mxu0 0.0
    %2019 = vmatpush1.msra.mxu0 0.0
    %2020 = vmatprep.subr.mxu0 0.0
    %2021 = vmatpush1.msra.mxu0 0.0
    %2022 = vmatprep.subr.mxu0 0.0
    %2023 = vmatpush1.msra.mxu0 0.0
    %2024 = vmatprep.subr.mxu0 0.0
    %2025 = vmatpush1.msra.mxu0 0.0
    %2026 = vmatprep.subr.mxu0 0.0
    %2027 = vmatpush1.msra.mxu0 0.0
    %2028 = vmatprep.subr.mxu0 0.0
    %2029 = vmatpush1.msra.mxu0 0.0
    %2030 = vmatprep.subr.mxu0 0.0
    %2031 = vmatpush1.msra.mxu0 0.0
    %2032 = vmatprep.subr.mxu0 0.0
    %2033 = vmatpush1.msra.mxu0 0.0
    %2034 = vmatprep.subr.mxu0 0.0
    %2035 = vmatpush1.msra.mxu0 0.0
    %2036 = vmatprep.subr.mxu0 0.0
    %2037 = vmatpush1.msra.mxu0 0.0
    %2038 = vmatprep.subr.mxu0 0.0
    %2039 = vmatpush1.msra.mxu0 0.0
    %2040 = vmatprep.subr.mxu0 0.0
    %2041 = vmatpush1.msra.mxu0 0.0
    %2042 = vmatprep.subr.mxu0 0.0
    %2043 = vmatpush1.msra.mxu0 0.0
    %2044 = vmatprep.subr.mxu0 0.0
    %2045 = vmatpush1.msra.mxu0 0.0
    %2046 = vmatprep.mubr.f32.mxu0 0.0
    %2047 = vmatmul.mubr.f32.gmra.mrb[0].mxu0 %v1977
    %v2048 = vpop.f32.mrb[0].mxu0
    %v2049 = vadd.f32 0.0, %v2048
    %v2050 = vpop.f32.mrb[0].mxu0
    %v2051 = vadd.f32 0.0, %v2050
    %2052 = vdwg.mxu0
    %2053 = vmatprep.subr.mxu0 %v78
    %2054 = vmatpush1.msra.mxu0 %v77
    %2055 = vmatprep.subr.mxu0 %v82
    %2056 = vmatpush1.msra.mxu0 %v81
    %2057 = vmatprep.subr.mxu0 %v86
    %2058 = vmatpush1.msra.mxu0 %v85
    %2059 = vmatprep.subr.mxu0 %v90
    %2060 = vmatpush1.msra.mxu0 %v89
    %2061 = vmatprep.subr.mxu0 %v94
    %2062 = vmatpush1.msra.mxu0 %v93
    %2063 = vmatprep.subr.mxu0 %v98
    %2064 = vmatpush1.msra.mxu0 %v97
    %2065 = vmatprep.subr.mxu0 %v102
    %2066 = vmatpush1.msra.mxu0 %v101
    %2067 = vmatprep.subr.mxu0 %v106
    %2068 = vmatpush1.msra.mxu0 %v105
    %2069 = vmatprep.subr.mxu0 %v110
    %2070 = vmatpush1.msra.mxu0 %v109
    %2071 = vmatprep.subr.mxu0 %v114
    %2072 = vmatpush1.msra.mxu0 %v113
    %2073 = vmatprep.subr.mxu0 %v118
    %2074 = vmatpush1.msra.mxu0 %v117
    %2075 = vmatprep.subr.mxu0 %v122
    %2076 = vmatpush1.msra.mxu0 %v121
    %2077 = vmatprep.subr.mxu0 %v126
    %2078 = vmatpush1.msra.mxu0 %v125
    %2079 = vmatprep.subr.mxu0 %v130
    %2080 = vmatpush1.msra.mxu0 %v129
    %2081 = vmatprep.subr.mxu0 %v134
    %2082 = vmatpush1.msra.mxu0 %v133
    %2083 = vmatprep.subr.mxu0 %v138
    %2084 = vmatpush1.msra.mxu0 %v137
    %2085 = vmatprep.subr.mxu0 0.0
    %2086 = vmatpush1.msra.mxu0 0.0
    %2087 = vmatprep.subr.mxu0 0.0
    %2088 = vmatpush1.msra.mxu0 0.0
    %2089 = vmatprep.subr.mxu0 0.0
    %2090 = vmatpush1.msra.mxu0 0.0
    %2091 = vmatprep.subr.mxu0 0.0
    %2092 = vmatpush1.msra.mxu0 0.0
    %2093 = vmatprep.subr.mxu0 0.0
    %2094 = vmatpush1.msra.mxu0 0.0
    %2095 = vmatprep.subr.mxu0 0.0
    %2096 = vmatpush1.msra.mxu0 0.0
    %2097 = vmatprep.subr.mxu0 0.0
    %2098 = vmatpush1.msra.mxu0 0.0
    %2099 = vmatprep.subr.mxu0 0.0
    %2100 = vmatpush1.msra.mxu0 0.0
    %2101 = vmatprep.subr.mxu0 0.0
    %2102 = vmatpush1.msra.mxu0 0.0
    %2103 = vmatprep.subr.mxu0 0.0
    %2104 = vmatpush1.msra.mxu0 0.0
    %2105 = vmatprep.subr.mxu0 0.0
    %2106 = vmatpush1.msra.mxu0 0.0
    %2107 = vmatprep.subr.mxu0 0.0
    %2108 = vmatpush1.msra.mxu0 0.0
    %2109 = vmatprep.subr.mxu0 0.0
    %2110 = vmatpush1.msra.mxu0 0.0
    %2111 = vmatprep.subr.mxu0 0.0
    %2112 = vmatpush1.msra.mxu0 0.0
    %2113 = vmatprep.subr.mxu0 0.0
    %2114 = vmatpush1.msra.mxu0 0.0
    %2115 = vmatprep.subr.mxu0 0.0
    %2116 = vmatpush1.msra.mxu0 0.0
    %2117 = vmatprep.mubr.f32.mxu0 0.0
    %2118 = vmatmul.mubr.f32.gmra.mrb[0].mxu0 %v1977
    %v2119 = vpop.f32.mrb[0].mxu0
    %v2120 = vadd.f32 0.0, %v2119
    %v2121 = vpop.f32.mrb[0].mxu0
    %v2122 = vadd.f32 0.0, %v2121
    %2123 = vdwg.mxu0
    %v2124 = vadd.f32 %v1978, %v2049
    %v2125 = vadd.f32 %v1979, %v2051
    %v2126 = vadd.f32 %v1980, %v2120
    %v2127 = vadd.f32 %v1981, %v2122
    %v2128 = vmul.f32 %v2124, 0.5
    %v2129 = vmul.f32 %v2125, 0.5
    %v2130 = vtanh.pop %v2128
    %v2131 = vtanh.pop %v2129
    %v2132 = vadd.f32 %v2130, 1.0
    %v2133 = vadd.f32 %v2131, 1.0
    %v2134 = vmul.f32 %v2132, 0.5
    %v2135 = vmul.f32 %v2133, 0.5
    %v2136 = vtanh.pop %v2126
    %v2137 = vmul.f32 %v2127, 0.5
    %v2138 = vtanh.pop %v2137
    %v2139 = vadd.f32 %v2138, 1.0
    %v2140 = vmul.f32 %v2139, 0.5
    %v2141 = vmul.f32 %v2135, %v1975
    %v2142 = vmul.f32 %v2134, %v2136
    %v2143 = vadd.f32 %v2141, %v2142
    %v2144 = vtanh.pop %v2143
    %v2145 = vmul.f32 %v2140, %v2144
    %v2146 = vld [vmem:[%s965] sm:$0xff]
    %v2147 = vld [vmem:[%s965 + $0x8] sm:$0xff]
    %v2148 = vld [vmem:[%s965 + $0x10] sm:$0xff]
    %v2149 = vld [vmem:[%s965 + $0x18] sm:$0xff]
    %2150 = vmatprep.subr.mxu0 %v76
    %2151 = vmatpush1.msra.mxu0 %v75
    %2152 = vmatprep.subr.mxu0 %v80
    %2153 = vmatpush1.msra.mxu0 %v79
    %2154 = vmatprep.subr.mxu0 %v84
    %2155 = vmatpush1.msra.mxu0 %v83
    %2156 = vmatprep.subr.mxu0 %v88
    %2157 = vmatpush1.msra.mxu0 %v87
    %2158 = vmatprep.subr.mxu0 %v92
    %2159 = vmatpush1.msra.mxu0 %v91
    %2160 = vmatprep.subr.mxu0 %v96
    %2161 = vmatpush1.msra.mxu0 %v95
    %2162 = vmatprep.subr.mxu0 %v100
    %2163 = vmatpush1.msra.mxu0 %v99
    %2164 = vmatprep.subr.mxu0 %v104
    %2165 = vmatpush1.msra.mxu0 %v103
    %2166 = vmatprep.subr.mxu0 %v108
    %2167 = vmatpush1.msra.mxu0 %v107
    %2168 = vmatprep.subr.mxu0 %v112
    %2169 = vmatpush1.msra.mxu0 %v111
    %2170 = vmatprep.subr.mxu0 %v116
    %2171 = vmatpush1.msra.mxu0 %v115
    %2172 = vmatprep.subr.mxu0 %v120
    %2173 = vmatpush1.msra.mxu0 %v119
    %2174 = vmatprep.subr.mxu0 %v124
    %2175 = vmatpush1.msra.mxu0 %v123
    %2176 = vmatprep.subr.mxu0 %v128
    %2177 = vmatpush1.msra.mxu0 %v127
    %2178 = vmatprep.subr.mxu0 %v132
    %2179 = vmatpush1.msra.mxu0 %v131
    %2180 = vmatprep.subr.mxu0 %v136
    %2181 = vmatpush1.msra.mxu0 %v135
    %2182 = vmatprep.subr.mxu0 0.0
    %2183 = vmatpush1.msra.mxu0 0.0
    %2184 = vmatprep.subr.mxu0 0.0
    %2185 = vmatpush1.msra.mxu0 0.0
    %2186 = vmatprep.subr.mxu0 0.0
    %2187 = vmatpush1.msra.mxu0 0.0
    %2188 = vmatprep.subr.mxu0 0.0
    %2189 = vmatpush1.msra.mxu0 0.0
    %2190 = vmatprep.subr.mxu0 0.0
    %2191 = vmatpush1.msra.mxu0 0.0
    %2192 = vmatprep.subr.mxu0 0.0
    %2193 = vmatpush1.msra.mxu0 0.0
    %2194 = vmatprep.subr.mxu0 0.0
    %2195 = vmatpush1.msra.mxu0 0.0
    %2196 = vmatprep.subr.mxu0 0.0
    %2197 = vmatpush1.msra.mxu0 0.0
    %2198 = vmatprep.subr.mxu0 0.0
    %2199 = vmatpush1.msra.mxu0 0.0
    %2200 = vmatprep.subr.mxu0 0.0
    %2201 = vmatpush1.msra.mxu0 0.0
    %2202 = vmatprep.subr.mxu0 0.0
    %2203 = vmatpush1.msra.mxu0 0.0
    %2204 = vmatprep.subr.mxu0 0.0
    %2205 = vmatpush1.msra.mxu0 0.0
    %2206 = vmatprep.subr.mxu0 0.0
    %2207 = vmatpush1.msra.mxu0 0.0
    %2208 = vmatprep.subr.mxu0 0.0
    %2209 = vmatpush1.msra.mxu0 0.0
    %2210 = vmatprep.subr.mxu0 0.0
    %2211 = vmatpush1.msra.mxu0 0.0
    %2212 = vmatprep.subr.mxu0 0.0
    %2213 = vmatpush1.msra.mxu0 0.0
    %2214 = vmatprep.mubr.f32.mxu0 0.0
    %2215 = vmatmul.mubr.f32.gmra.mrb[0].mxu0 %v2145
    %v2216 = vpop.f32.mrb[0].mxu0
    %v2217 = vadd.f32 0.0, %v2216
    %v2218 = vpop.f32.mrb[0].mxu0
    %v2219 = vadd.f32 0.0, %v2218
    %2220 = vdwg.mxu0
    %2221 = vmatprep.subr.mxu0 %v78
    %2222 = vmatpush1.msra.mxu0 %v77
    %2223 = vmatprep.subr.mxu0 %v82
    %2224 = vmatpush1.msra.mxu0 %v81
    %2225 = vmatprep.subr.mxu0 %v86
    %2226 = vmatpush1.msra.mxu0 %v85
    %2227 = vmatprep.subr.mxu0 %v90
    %2228 = vmatpush1.msra.mxu0 %v89
    %2229 = vmatprep.subr.mxu0 %v94
    %2230 = vmatpush1.msra.mxu0 %v93
    %2231 = vmatprep.subr.mxu0 %v98
    %2232 = vmatpush1.msra.mxu0 %v97
    %2233 = vmatprep.subr.mxu0 %v102
    %2234 = vmatpush1.msra.mxu0 %v101
    %2235 = vmatprep.subr.mxu0 %v106
    %2236 = vmatpush1.msra.mxu0 %v105
    %2237 = vmatprep.subr.mxu0 %v110
    %2238 = vmatpush1.msra.mxu0 %v109
    %2239 = vmatprep.subr.mxu0 %v114
    %2240 = vmatpush1.msra.mxu0 %v113
    %2241 = vmatprep.subr.mxu0 %v118
    %2242 = vmatpush1.msra.mxu0 %v117
    %2243 = vmatprep.subr.mxu0 %v122
    %2244 = vmatpush1.msra.mxu0 %v121
    %2245 = vmatprep.subr.mxu0 %v126
    %2246 = vmatpush1.msra.mxu0 %v125
    %2247 = vmatprep.subr.mxu0 %v130
    %2248 = vmatpush1.msra.mxu0 %v129
    %2249 = vmatprep.subr.mxu0 %v134
    %2250 = vmatpush1.msra.mxu0 %v133
    %2251 = vmatprep.subr.mxu0 %v138
    %2252 = vmatpush1.msra.mxu0 %v137
    %2253 = vmatprep.subr.mxu0 0.0
    %2254 = vmatpush1.msra.mxu0 0.0
    %2255 = vmatprep.subr.mxu0 0.0
    %2256 = vmatpush1.msra.mxu0 0.0
    %2257 = vmatprep.subr.mxu0 0.0
    %2258 = vmatpush1.msra.mxu0 0.0
    %2259 = vmatprep.subr.mxu0 0.0
    %2260 = vmatpush1.msra.mxu0 0.0
    %2261 = vmatprep.subr.mxu0 0.0
    %2262 = vmatpush1.msra.mxu0 0.0
    %2263 = vmatprep.subr.mxu0 0.0
    %2264 = vmatpush1.msra.mxu0 0.0
    %2265 = vmatprep.subr.mxu0 0.0
    %2266 = vmatpush1.msra.mxu0 0.0
    %2267 = vmatprep.subr.mxu0 0.0
    %2268 = vmatpush1.msra.mxu0 0.0
    %2269 = vmatprep.subr.mxu0 0.0
    %2270 = vmatpush1.msra.mxu0 0.0
    %2271 = vmatprep.subr.mxu0 0.0
    %2272 = vmatpush1.msra.mxu0 0.0
    %2273 = vmatprep.subr.mxu0 0.0
    %2274 = vmatpush1.msra.mxu0 0.0
    %2275 = vmatprep.subr.mxu0 0.0
    %2276 = vmatpush1.msra.mxu0 0.0
    %2277 = vmatprep.subr.mxu0 0.0
    %2278 = vmatpush1.msra.mxu0 0.0
    %2279 = vmatprep.subr.mxu0 0.0
    %2280 = vmatpush1.msra.mxu0 0.0
    %2281 = vmatprep.subr.mxu0 0.0
    %2282 = vmatpush1.msra.mxu0 0.0
    %2283 = vmatprep.subr.mxu0 0.0
    %2284 = vmatpush1.msra.mxu0 0.0
    %2285 = vmatprep.mubr.f32.mxu0 0.0
    %2286 = vmatmul.mubr.f32.gmra.mrb[0].mxu0 %v2145
    %v2287 = vpop.f32.mrb[0].mxu0
    %v2288 = vadd.f32 0.0, %v2287
    %v2289 = vpop.f32.mrb[0].mxu0
    %v2290 = vadd.f32 0.0, %v2289
    %2291 = vdwg.mxu0
    %v2292 = vadd.f32 %v2146, %v2217
    %v2293 = vadd.f32 %v2147, %v2219
    %v2294 = vadd.f32 %v2148, %v2288
    %v2295 = vadd.f32 %v2149, %v2290
    %v2296 = vmul.f32 %v2292, 0.5
    %v2297 = vmul.f32 %v2293, 0.5
    %v2298 = vtanh.pop %v2296
    %v2299 = vtanh.pop %v2297
    %v2300 = vadd.f32 %v2298, 1.0
    %v2301 = vadd.f32 %v2299, 1.0
    %v2302 = vmul.f32 %v2300, 0.5
    %v2303 = vmul.f32 %v2301, 0.5
    %v2304 = vtanh.pop %v2294
    %v2305 = vmul.f32 %v2295, 0.5
    %v2306 = vtanh.pop %v2305
    %v2307 = vadd.f32 %v2306, 1.0
    %v2308 = vmul.f32 %v2307, 0.5
    %v2309 = vmul.f32 %v2303, %v2143
    %v2310 = vmul.f32 %v2302, %v2304
    %v2311 = vadd.f32 %v2309, %v2310
    %v2312 = vtanh.pop %v2311
    %v2313 = vmul.f32 %v2308, %v2312
    %2314 = vst [vmem:[#allocation9] sm:$0xff] %v2313
    // Predicated region
    $region30: #{tpu_custom_call.1} parent=1 // pred_check
      _
    $region31: #{tpu_custom_call.1} parent=1 // pred_check_branch
      %2316 = sbr.rel (0) target = $region33
    $region32: #{tpu_custom_call.1} parent=1 // pred_region
      %s2318 = ssub.s32 128, 128
      %2319 = vsyncadd [#allocation5], %s2318
      %s2321 = sshll.u32 [#allocation9], 4
      %s2322 = int_to_ptr.vmem [resolvable:$true] %s2321
      %2324 = dma.vmem_to_hbm [thread:$0]  %s2322, 128, %s4, [#allocation5]
    $region33: #{tpu_custom_call.1} parent=1 // pred_fallthru
      _
    // Predicated region
    $region34: #{tpu_custom_call.1} parent=1 // pred_check
      _
    $region35: #{tpu_custom_call.1} parent=1 // pred_check_branch
      %2326 = sbr.rel (0) target = $region37
    $region36: #{tpu_custom_call.1} parent=1 // pred_region
      %2327 = dma.done [#allocation5], 128
    $region37: #{tpu_custom_call.1} parent=1 // pred_fallthru
      _
    %2328 = vsyncpa [#allocation4], 1
    %2329 = vsyncpa [#allocation7], 1
    %2330 = vsyncpa [#allocation5], 1

</llo_original>
